<compile_context>
chip_gen: v7x
topology: tpu7x:2x2x1
jax: 0.10.0
libtpu: 0.0.40
codegen_flags: <defaults>
</compile_context>

<pallas_src>
import functools

import numpy as np

import jax
import jax.numpy as jnp
from jax.experimental import pallas as pl
from jax.experimental.pallas import tpu as pltpu


# ----------------------------------------------------------------------------
# One-time (host-side) weight preprocessing
# ----------------------------------------------------------------------------
def _conv1_matrix(w1, c_in):
    """(6, C, 5, 5) -> (5*32*C, 28*6).  m[i*32C + w*C + c, ow*6 + oc] =
    w1[oc, c, i, w-ow] for 0 <= w-ow <= 4 (im2col folded into the weights,
    5 bands pre-concatenated along K)."""
    m = np.zeros((5 * 32 * c_in, 28 * 6), np.float32)
    for i in range(5):
        for ow in range(28):
            for j in range(5):
                w = ow + j
                for c in range(c_in):
                    m[i * 32 * c_in + w * c_in + c,
                      ow * 6:(ow + 1) * 6] = w1[:, c, i, j]
    return m


def _conv2_matrix(w2):
    """(16, 6, 5, 5) -> (5*84, 10*16).  m[i*84 + q*6 + c, ow*16 + oc] =
    w2[oc, c, i, q-ow] for 0 <= q-ow <= 4."""
    m = np.zeros((5 * 84, 10 * 16), np.float32)
    for i in range(5):
        for ow in range(10):
            for j in range(5):
                q = ow + j
                for c in range(6):
                    m[i * 84 + q * 6 + c, ow * 16:(ow + 1) * 16] = w2[:, c, i, j]
    return m


def _lane_pool_matrix(w_out, ch):
    """Width-pair average as a right matmul: (2*w_out*ch, w_out*ch), 0.5 coeffs."""
    m = np.zeros((2 * w_out * ch, w_out * ch), np.float32)
    for v in range(w_out):
        for c in range(ch):
            m[(2 * v) * ch + c, v * ch + c] = 0.5
            m[(2 * v + 1) * ch + c, v * ch + c] = 0.5
    return m


def prepare_kernel_params(params, input_channel, output_dim):
    """Fold im2col / pooling / NCHW-flatten / transposes into the weights once."""
    c = input_channel
    w1 = np.asarray(params["conv1_w"], np.float32)   # (6, C, 5, 5)
    b1 = np.asarray(params["conv1_b"], np.float32)
    w2 = np.asarray(params["conv2_w"], np.float32)   # (16, 6, 5, 5)
    b2 = np.asarray(params["conv2_b"], np.float32)
    fw1 = np.asarray(params["fc1_w"], np.float32)    # (120, 400)
    fb1 = np.asarray(params["fc1_b"], np.float32)
    fw2 = np.asarray(params["fc2_w"], np.float32)    # (84, 120)
    fb2 = np.asarray(params["fc2_b"], np.float32)
    fw3 = np.asarray(params["fc3_w"], np.float32)    # (out, 84)
    fb3 = np.asarray(params["fc3_b"], np.float32)

    kp = {}
    kp["m1"] = jnp.asarray(_conv1_matrix(w1, c))                    # (160*C, 168)
    kp["b1"] = jnp.asarray(np.tile(b1, 28).reshape(1, 168))         # lane = ow*6+oc
    kp["pw1"] = jnp.asarray(_lane_pool_matrix(14, 6))               # (168, 84)
    kp["m2"] = jnp.asarray(_conv2_matrix(w2))                       # (420, 160)
    kp["b2"] = jnp.asarray(np.tile(b2, 10).reshape(1, 160))
    kp["pw2"] = jnp.asarray(_lane_pool_matrix(5, 16))               # (160, 80)

    # FC1: fold the PyTorch NCHW flatten (c*25 + h*5 + w) into the (q, v, c)
    # kernel layout of the pooled activation; pad N: 120 -> 128 lanes.
    w1e = np.zeros((400, 128), np.float32)
    for q in range(5):
        for v in range(5):
            for oc in range(16):
                w1e[q * 80 + v * 16 + oc, :120] = fw1[:, oc * 25 + q * 5 + v]
    kp["w1"] = jnp.asarray(w1e)                                     # (400, 128)
    kp["fb1"] = jnp.asarray(np.pad(fb1, (0, 128 - 120)).reshape(1, 128))

    w2e = np.zeros((128, 128), np.float32)
    w2e[:120, :84] = fw2.T                                          # pre-transposed
    kp["w2"] = jnp.asarray(w2e)
    kp["fb2"] = jnp.asarray(np.pad(fb2, (0, 128 - 84)).reshape(1, 128))

    w3e = np.zeros((128, 128), np.float32)
    w3e[:84, :output_dim] = fw3.T
    kp["w3"] = jnp.asarray(w3e)
    kp["fb3"] = jnp.asarray(np.pad(fb3, (0, 128 - output_dim)).reshape(1, 128))
    return kp


# ----------------------------------------------------------------------------
# The fused, batch-tiled Pallas kernel (B_TILE images per grid step)
# ----------------------------------------------------------------------------
def _lenet5_kernel(bt, x_ref, m1_ref, b1_ref, pw1_ref, m2_ref, b2_ref, pw2_ref,
                   w1_ref, fb1_ref, w2_ref, fb2_ref, w3_ref, fb3_ref, o_ref):
    f32 = jnp.float32
    x = x_ref[...]                                                # (32*bt, 32*C)

    # ---- CONV1 + bias + ReLU: 5 shifted row-block windows concatenated along
    #      K -> ONE matmul with M = 28*bt.  Rows: oh*bt + b.
    l1 = jnp.concatenate([x[i * bt:(i + 28) * bt, :] for i in range(5)], axis=1)
    y1 = jnp.maximum(jnp.dot(l1, m1_ref[...], preferred_element_type=f32)
                     + b1_ref[...], 0.0)                          # (28*bt, 168)

    # ---- POOL1: width pairs via matmul, height pairs via shifted row-block add.
    t1 = jnp.dot(y1, pw1_ref[...], preferred_element_type=f32)    # (28*bt, 84)
    ts1 = 0.5 * (t1[0:27 * bt, :] + t1[bt:28 * bt, :])            # (27*bt, 84)
    # pooled value for height p of image b sits at row (2p)*bt + b.

    # ---- CONV2 + bias + ReLU: valid rows live at even height blocks, so the
    #      5 window offsets are 2*i*bt; one matmul with M = 19*bt.
    l2 = jnp.concatenate(
        [ts1[2 * i * bt:(2 * i + 19) * bt, :] for i in range(5)], axis=1)
    y2 = jnp.maximum(jnp.dot(l2, m2_ref[...], preferred_element_type=f32)
                     + b2_ref[...], 0.0)                          # (19*bt, 160)
    # valid rows: (2*oh)*bt + b, oh in [0, 10).

    # ---- POOL2.
    t2 = jnp.dot(y2, pw2_ref[...], preferred_element_type=f32)    # (19*bt, 80)
    ts2 = 0.5 * (t2[0:17 * bt, :] + t2[2 * bt:19 * bt, :])        # (17*bt, 80)
    # pooled value for height q of image b sits at row (4q)*bt + b.

    # ---- FC1 input: gather the 5 pooled height rows per image with aligned
    #      B_TILE-row slices + lane concat -> compact (bt, 400).
    s = jnp.concatenate(
        [ts2[4 * q * bt:(4 * q + 1) * bt, :] for q in range(5)], axis=1)

    # ---- FC1..FC3 (widths padded to 128 lanes -> lane-dense, unmasked stores).
    h = jnp.maximum(jnp.dot(s, w1_ref[...], preferred_element_type=f32)
                    + fb1_ref[...], 0.0)                          # (bt, 128)
    h = jnp.maximum(jnp.dot(h, w2_ref[...], preferred_element_type=f32)
                    + fb2_ref[...], 0.0)
    o_ref[...] = (jnp.dot(h, w3_ref[...], preferred_element_type=f32)
                  + fb3_ref[...]).astype(o_ref.dtype)


def make_lenet5_forward(input_channel, output_dim):
    c_in = input_channel

    def fwd(kp, x):
        btot = x.shape[0]
        # Batch tile: multiple of 8 (sublane), capped at 128.  Conv matmuls get
        # M = 28*bt regardless; FCs get M = bt.  Keeps VMEM footprint modest.
        bt = min(128, max(8, ((btot + 7) // 8) * 8))
        n_tiles = (btot + bt - 1) // bt
        pad = n_tiles * bt - btot
        xp = jnp.pad(x, ((0, pad), (0, 0), (0, 0), (0, 0))) if pad else x
        # NCHW -> (T, 32*bt, 32*C) with row = h*bt + b, lane = w*C + c.
        xt = (xp.reshape(n_tiles, bt, c_in, 32, 32)
                .transpose(0, 3, 1, 4, 2)
                .reshape(n_tiles, 32 * bt, 32 * c_in))

        weights = (kp["m1"], kp["b1"], kp["pw1"], kp["m2"], kp["b2"], kp["pw2"],
                   kp["w1"], kp["fb1"], kp["w2"], kp["fb2"], kp["w3"], kp["fb3"])

        flops = 2 * n_tiles * bt * (
            28 * (160 * c_in) * 168      # conv1
            + 28 * 168 * 84              # pool1 (lane)
            + 19 * 420 * 160             # conv2
            + 19 * 160 * 80              # pool2 (lane)
            + 400 * 128                  # fc1
            + 2 * 128 * 128)             # fc2 + fc3
        bytes_accessed = int(xt.size * 4 + sum(w.size * 4 for w in weights)
                             + n_tiles * bt * 128 * 4)

        grid_spec = pltpu.PrefetchScalarGridSpec(
            num_scalar_prefetch=0,
            grid=(n_tiles,),
            in_specs=[pl.BlockSpec((None, 32 * bt, 32 * c_in),
                                   lambda t: (t, 0, 0))]          # x (per tile)
                     + [pl.BlockSpec(w.shape, lambda t: (0, 0))   # weights
                        for w in weights],
            out_specs=pl.BlockSpec((bt, 128), lambda t: (t, 0)),
        )

        out = pl.pallas_call(
            functools.partial(_lenet5_kernel, bt),
            out_shape=jax.ShapeDtypeStruct((n_tiles * bt, 128), jnp.float32),
            grid_spec=grid_spec,
            compiler_params=pltpu.CompilerParams(
                dimension_semantics=("parallel",),
                vmem_limit_bytes=40 * 1024 * 1024),
            cost_estimate=pl.CostEstimate(flops=flops, transcendentals=0,
                                          bytes_accessed=bytes_accessed),
        )(xt, *weights)
        return out[:btot, :output_dim]

    return jax.jit(fwd)


# ----------------------------------------------------------------------------
# Parameter init (deterministic, PyTorch-default-style uniform bounds)
# ----------------------------------------------------------------------------
def init_params(key, input_channel, output_dim):
    def uniform(k, shape, fan_in):
        bound = 1.0 / jnp.sqrt(jnp.float32(fan_in))
        return jax.random.uniform(k, shape, jnp.float32, -bound, bound)

    keys = jax.random.split(key, 10)
    return {
        "conv1_w": uniform(keys[0], (6, input_channel, 5, 5), input_channel * 25),
        "conv1_b": uniform(keys[1], (6,), input_channel * 25),
        "conv2_w": uniform(keys[2], (16, 6, 5, 5), 6 * 25),
        "conv2_b": uniform(keys[3], (16,), 6 * 25),
        "fc1_w": uniform(keys[4], (120, 400), 400),
        "fc1_b": uniform(keys[5], (120,), 400),
        "fc2_w": uniform(keys[6], (84, 120), 120),
        "fc2_b": uniform(keys[7], (84,), 120),
        "fc3_w": uniform(keys[8], (output_dim, 84), 84),
        "fc3_b": uniform(keys[9], (output_dim,), 84),
    }


# ----------------------------------------------------------------------------
# Pure-JAX reference (mirrors LeNet_5.forward) for the correctness check
# ----------------------------------------------------------------------------
@jax.jit
def lenet5_reference(params, x):
    hi = jax.lax.Precision.HIGHEST
    h = jax.lax.conv_general_dilated(x, params["conv1_w"], (1, 1), "VALID",
                                     dimension_numbers=("NCHW", "OIHW", "NCHW"),
                                     precision=hi)
    h = jax.nn.relu(h + params["conv1_b"][None, :, None, None])
    h = jax.lax.reduce_window(h, 0.0, jax.lax.add,
                              (1, 1, 2, 2), (1, 1, 2, 2), "VALID") * 0.25
    h = jax.lax.conv_general_dilated(h, params["conv2_w"], (1, 1), "VALID",
                                     dimension_numbers=("NCHW", "OIHW", "NCHW"),
                                     precision=hi)
    h = jax.nn.relu(h + params["conv2_b"][None, :, None, None])
    h = jax.lax.reduce_window(h, 0.0, jax.lax.add,
                              (1, 1, 2, 2), (1, 1, 2, 2), "VALID") * 0.25
    h = h.reshape(x.shape[0], -1)
    h = jax.nn.relu(jnp.dot(h, params["fc1_w"].T, precision=hi) + params["fc1_b"])
    h = jax.nn.relu(jnp.dot(h, params["fc2_w"].T, precision=hi) + params["fc2_b"])
    return jnp.dot(h, params["fc3_w"].T, precision=hi) + params["fc3_b"]


if __name__ == "__main__":
    # LeNet-5 geometry is fixed by FC1 (400 = 16*5*5): input must be 32x32.
    batch, input_channel, output_dim = 2, 1, 10

    key = jax.random.PRNGKey(0)
    k_param, k_input = jax.random.split(key)
    params = init_params(k_param, input_channel, output_dim)
    kparams = prepare_kernel_params(params, input_channel, output_dim)
    x = jax.random.normal(k_input, (batch, input_channel, 32, 32), jnp.float32)

    forward = make_lenet5_forward(input_channel, output_dim)
    out = jax.block_until_ready(forward(kparams, x))
    assert out.shape == (batch, output_dim), out.shape

    ref = jax.block_until_ready(lenet5_reference(params, x))
    # f32 end-to-end: tightened vs. the old 2e-2 so layout/band bugs can't hide.
    np.testing.assert_allclose(np.asarray(out), np.asarray(ref),
                               rtol=1e-3, atol=1e-3)
    print("KERNEL_OK")
</pallas_src>

<mosaic_0001>
module attributes {stable_mosaic.version = 11 : i64} {
  func.func @_lenet5_kernel(%arg0: i32, %arg1: memref<1x256x32xf32, #tpu.memory_space<vmem>>, %arg2: memref<160x168xf32, #tpu.memory_space<vmem>>, %arg3: memref<1x168xf32, #tpu.memory_space<vmem>>, %arg4: memref<168x84xf32, #tpu.memory_space<vmem>>, %arg5: memref<420x160xf32, #tpu.memory_space<vmem>>, %arg6: memref<1x160xf32, #tpu.memory_space<vmem>>, %arg7: memref<160x80xf32, #tpu.memory_space<vmem>>, %arg8: memref<400x128xf32, #tpu.memory_space<vmem>>, %arg9: memref<1x128xf32, #tpu.memory_space<vmem>>, %arg10: memref<128x128xf32, #tpu.memory_space<vmem>>, %arg11: memref<1x128xf32, #tpu.memory_space<vmem>>, %arg12: memref<128x128xf32, #tpu.memory_space<vmem>>, %arg13: memref<1x128xf32, #tpu.memory_space<vmem>>, %arg14: memref<8x128xf32, #tpu.memory_space<vmem>>) attributes {dimension_semantics = [#tpu.dimension_semantics<parallel>], iteration_bounds = array<i64: 1>, scalar_prefetch = 0 : i64, scratch_operands = 0 : i64, tpu.core_type = #tpu.core_type<tc>, window_params = [{transform_indices = @transform_0, window_bounds = array<i64: 1, 256, 32>}, {pipeline_mode = #tpu.pipeline_mode<synchronous>, transform_indices = @transform_1, window_bounds = array<i64: 160, 168>}, {pipeline_mode = #tpu.pipeline_mode<synchronous>, transform_indices = @transform_2, window_bounds = array<i64: 1, 168>}, {pipeline_mode = #tpu.pipeline_mode<synchronous>, transform_indices = @transform_3, window_bounds = array<i64: 168, 84>}, {pipeline_mode = #tpu.pipeline_mode<synchronous>, transform_indices = @transform_4, window_bounds = array<i64: 420, 160>}, {pipeline_mode = #tpu.pipeline_mode<synchronous>, transform_indices = @transform_5, window_bounds = array<i64: 1, 160>}, {pipeline_mode = #tpu.pipeline_mode<synchronous>, transform_indices = @transform_6, window_bounds = array<i64: 160, 80>}, {pipeline_mode = #tpu.pipeline_mode<synchronous>, transform_indices = @transform_7, window_bounds = array<i64: 400, 128>}, {pipeline_mode = #tpu.pipeline_mode<synchronous>, transform_indices = @transform_8, window_bounds = array<i64: 1, 128>}, {pipeline_mode = #tpu.pipeline_mode<synchronous>, transform_indices = @transform_9, window_bounds = array<i64: 128, 128>}, {pipeline_mode = #tpu.pipeline_mode<synchronous>, transform_indices = @transform_10, window_bounds = array<i64: 1, 128>}, {pipeline_mode = #tpu.pipeline_mode<synchronous>, transform_indices = @transform_11, window_bounds = array<i64: 128, 128>}, {pipeline_mode = #tpu.pipeline_mode<synchronous>, transform_indices = @transform_12, window_bounds = array<i64: 1, 128>}, {transform_indices = @transform_13, window_bounds = array<i64: 8, 128>}]} {
    %c0 = arith.constant 0 : index
    %c0_0 = arith.constant 0 : index
    %c0_1 = arith.constant 0 : index
    %0 = vector.load %arg1[%c0, %c0_0, %c0_1] : memref<1x256x32xf32, #tpu.memory_space<vmem>>, vector<1x256x32xf32>
    %1 = vector.shape_cast %0 : vector<1x256x32xf32> to vector<256x32xf32>
    %2 = vector.extract_strided_slice %1 {offsets = [0, 0], sizes = [224, 32], strides = [1, 1]} : vector<256x32xf32> to vector<224x32xf32>
    %3 = vector.extract_strided_slice %1 {offsets = [8, 0], sizes = [224, 32], strides = [1, 1]} : vector<256x32xf32> to vector<224x32xf32>
    %4 = vector.extract_strided_slice %1 {offsets = [16, 0], sizes = [224, 32], strides = [1, 1]} : vector<256x32xf32> to vector<224x32xf32>
    %5 = vector.extract_strided_slice %1 {offsets = [24, 0], sizes = [224, 32], strides = [1, 1]} : vector<256x32xf32> to vector<224x32xf32>
    %6 = vector.extract_strided_slice %1 {offsets = [32, 0], sizes = [224, 32], strides = [1, 1]} : vector<256x32xf32> to vector<224x32xf32>
    %7 = tpu.concatenate %2, %3, %4, %5, %6 in 1 : vector<224x32xf32>, vector<224x32xf32>, vector<224x32xf32>, vector<224x32xf32>, vector<224x32xf32> -> vector<224x160xf32>
    %c0_2 = arith.constant 0 : index
    %c0_3 = arith.constant 0 : index
    %8 = vector.load %arg2[%c0_2, %c0_3] : memref<160x168xf32, #tpu.memory_space<vmem>>, vector<160x168xf32>
    %cst = arith.constant dense<0.000000e+00> : vector<224x168xf32>
    %9 = tpu.matmul %7, %8, %cst {dimension_numbers = #tpu.dot_dimension_numbers<[1], [0], [0], [1], [0, 0, 1, 1], [], []>} : vector<224x160xf32>, vector<160x168xf32>, vector<224x168xf32> -> vector<224x168xf32>
    %c0_4 = arith.constant 0 : index
    %c0_5 = arith.constant 0 : index
    %10 = vector.load %arg3[%c0_4, %c0_5] : memref<1x168xf32, #tpu.memory_space<vmem>>, vector<1x168xf32>
    %11 = vector.broadcast %10 : vector<1x168xf32> to vector<224x168xf32>
    %12 = arith.addf %9, %11 : vector<224x168xf32>
    %cst_6 = arith.constant 0.000000e+00 : f32
    %13 = vector.broadcast %cst_6 : f32 to vector<224x168xf32>
    %14 = arith.maximumf %12, %13 : vector<224x168xf32>
    %c0_7 = arith.constant 0 : index
    %c0_8 = arith.constant 0 : index
    %15 = vector.load %arg4[%c0_7, %c0_8] : memref<168x84xf32, #tpu.memory_space<vmem>>, vector<168x84xf32>
    %cst_9 = arith.constant dense<0.000000e+00> : vector<224x84xf32>
    %16 = tpu.matmul %14, %15, %cst_9 {dimension_numbers = #tpu.dot_dimension_numbers<[1], [0], [0], [1], [0, 0, 1, 1], [], []>} : vector<224x168xf32>, vector<168x84xf32>, vector<224x84xf32> -> vector<224x84xf32>
    %17 = vector.extract_strided_slice %16 {offsets = [0, 0], sizes = [216, 84], strides = [1, 1]} : vector<224x84xf32> to vector<216x84xf32>
    %18 = vector.extract_strided_slice %16 {offsets = [8, 0], sizes = [216, 84], strides = [1, 1]} : vector<224x84xf32> to vector<216x84xf32>
    %19 = arith.addf %17, %18 : vector<216x84xf32>
    %cst_10 = arith.constant 5.000000e-01 : f32
    %20 = vector.broadcast %cst_10 : f32 to vector<216x84xf32>
    %21 = arith.mulf %20, %19 : vector<216x84xf32>
    %22 = vector.extract_strided_slice %21 {offsets = [0, 0], sizes = [152, 84], strides = [1, 1]} : vector<216x84xf32> to vector<152x84xf32>
    %23 = vector.extract_strided_slice %21 {offsets = [16, 0], sizes = [152, 84], strides = [1, 1]} : vector<216x84xf32> to vector<152x84xf32>
    %24 = vector.extract_strided_slice %21 {offsets = [32, 0], sizes = [152, 84], strides = [1, 1]} : vector<216x84xf32> to vector<152x84xf32>
    %25 = vector.extract_strided_slice %21 {offsets = [48, 0], sizes = [152, 84], strides = [1, 1]} : vector<216x84xf32> to vector<152x84xf32>
    %26 = vector.extract_strided_slice %21 {offsets = [64, 0], sizes = [152, 84], strides = [1, 1]} : vector<216x84xf32> to vector<152x84xf32>
    %27 = tpu.concatenate %22, %23, %24, %25, %26 in 1 : vector<152x84xf32>, vector<152x84xf32>, vector<152x84xf32>, vector<152x84xf32>, vector<152x84xf32> -> vector<152x420xf32>
    %c0_11 = arith.constant 0 : index
    %c0_12 = arith.constant 0 : index
    %28 = vector.load %arg5[%c0_11, %c0_12] : memref<420x160xf32, #tpu.memory_space<vmem>>, vector<420x160xf32>
    %cst_13 = arith.constant dense<0.000000e+00> : vector<152x160xf32>
    %29 = tpu.matmul %27, %28, %cst_13 {dimension_numbers = #tpu.dot_dimension_numbers<[1], [0], [0], [1], [0, 0, 1, 1], [], []>} : vector<152x420xf32>, vector<420x160xf32>, vector<152x160xf32> -> vector<152x160xf32>
    %c0_14 = arith.constant 0 : index
    %c0_15 = arith.constant 0 : index
    %30 = vector.load %arg6[%c0_14, %c0_15] : memref<1x160xf32, #tpu.memory_space<vmem>>, vector<1x160xf32>
    %31 = vector.broadcast %30 : vector<1x160xf32> to vector<152x160xf32>
    %32 = arith.addf %29, %31 : vector<152x160xf32>
    %cst_16 = arith.constant 0.000000e+00 : f32
    %33 = vector.broadcast %cst_16 : f32 to vector<152x160xf32>
    %34 = arith.maximumf %32, %33 : vector<152x160xf32>
    %c0_17 = arith.constant 0 : index
    %c0_18 = arith.constant 0 : index
    %35 = vector.load %arg7[%c0_17, %c0_18] : memref<160x80xf32, #tpu.memory_space<vmem>>, vector<160x80xf32>
    %cst_19 = arith.constant dense<0.000000e+00> : vector<152x80xf32>
    %36 = tpu.matmul %34, %35, %cst_19 {dimension_numbers = #tpu.dot_dimension_numbers<[1], [0], [0], [1], [0, 0, 1, 1], [], []>} : vector<152x160xf32>, vector<160x80xf32>, vector<152x80xf32> -> vector<152x80xf32>
    %37 = vector.extract_strided_slice %36 {offsets = [0, 0], sizes = [136, 80], strides = [1, 1]} : vector<152x80xf32> to vector<136x80xf32>
    %38 = vector.extract_strided_slice %36 {offsets = [16, 0], sizes = [136, 80], strides = [1, 1]} : vector<152x80xf32> to vector<136x80xf32>
    %39 = arith.addf %37, %38 : vector<136x80xf32>
    %cst_20 = arith.constant 5.000000e-01 : f32
    %40 = vector.broadcast %cst_20 : f32 to vector<136x80xf32>
    %41 = arith.mulf %40, %39 : vector<136x80xf32>
    %42 = vector.extract_strided_slice %41 {offsets = [0, 0], sizes = [8, 80], strides = [1, 1]} : vector<136x80xf32> to vector<8x80xf32>
    %43 = vector.extract_strided_slice %41 {offsets = [32, 0], sizes = [8, 80], strides = [1, 1]} : vector<136x80xf32> to vector<8x80xf32>
    %44 = vector.extract_strided_slice %41 {offsets = [64, 0], sizes = [8, 80], strides = [1, 1]} : vector<136x80xf32> to vector<8x80xf32>
    %45 = vector.extract_strided_slice %41 {offsets = [96, 0], sizes = [8, 80], strides = [1, 1]} : vector<136x80xf32> to vector<8x80xf32>
    %46 = vector.extract_strided_slice %41 {offsets = [128, 0], sizes = [8, 80], strides = [1, 1]} : vector<136x80xf32> to vector<8x80xf32>
    %47 = tpu.concatenate %42, %43, %44, %45, %46 in 1 : vector<8x80xf32>, vector<8x80xf32>, vector<8x80xf32>, vector<8x80xf32>, vector<8x80xf32> -> vector<8x400xf32>
    %c0_21 = arith.constant 0 : index
    %c0_22 = arith.constant 0 : index
    %48 = vector.load %arg8[%c0_21, %c0_22] : memref<400x128xf32, #tpu.memory_space<vmem>>, vector<400x128xf32>
    %cst_23 = arith.constant dense<0.000000e+00> : vector<8x128xf32>
    %49 = tpu.matmul %47, %48, %cst_23 {dimension_numbers = #tpu.dot_dimension_numbers<[1], [0], [0], [1], [0, 0, 1, 1], [], []>} : vector<8x400xf32>, vector<400x128xf32>, vector<8x128xf32> -> vector<8x128xf32>
    %c0_24 = arith.constant 0 : index
    %c0_25 = arith.constant 0 : index
    %50 = vector.load %arg9[%c0_24, %c0_25] : memref<1x128xf32, #tpu.memory_space<vmem>>, vector<1x128xf32>
    %51 = vector.broadcast %50 : vector<1x128xf32> to vector<8x128xf32>
    %52 = arith.addf %49, %51 : vector<8x128xf32>
    %cst_26 = arith.constant 0.000000e+00 : f32
    %53 = vector.broadcast %cst_26 : f32 to vector<8x128xf32>
    %54 = arith.maximumf %52, %53 : vector<8x128xf32>
    %c0_27 = arith.constant 0 : index
    %c0_28 = arith.constant 0 : index
    %55 = vector.load %arg10[%c0_27, %c0_28] : memref<128x128xf32, #tpu.memory_space<vmem>>, vector<128x128xf32>
    %cst_29 = arith.constant dense<0.000000e+00> : vector<8x128xf32>
    %56 = tpu.matmul %54, %55, %cst_29 {dimension_numbers = #tpu.dot_dimension_numbers<[1], [0], [0], [1], [0, 0, 1, 1], [], []>} : vector<8x128xf32>, vector<128x128xf32>, vector<8x128xf32> -> vector<8x128xf32>
    %c0_30 = arith.constant 0 : index
    %c0_31 = arith.constant 0 : index
    %57 = vector.load %arg11[%c0_30, %c0_31] : memref<1x128xf32, #tpu.memory_space<vmem>>, vector<1x128xf32>
    %58 = vector.broadcast %57 : vector<1x128xf32> to vector<8x128xf32>
    %59 = arith.addf %56, %58 : vector<8x128xf32>
    %cst_32 = arith.constant 0.000000e+00 : f32
    %60 = vector.broadcast %cst_32 : f32 to vector<8x128xf32>
    %61 = arith.maximumf %59, %60 : vector<8x128xf32>
    %c0_33 = arith.constant 0 : index
    %c0_34 = arith.constant 0 : index
    %62 = vector.load %arg12[%c0_33, %c0_34] : memref<128x128xf32, #tpu.memory_space<vmem>>, vector<128x128xf32>
    %cst_35 = arith.constant dense<0.000000e+00> : vector<8x128xf32>
    %63 = tpu.matmul %61, %62, %cst_35 {dimension_numbers = #tpu.dot_dimension_numbers<[1], [0], [0], [1], [0, 0, 1, 1], [], []>} : vector<8x128xf32>, vector<128x128xf32>, vector<8x128xf32> -> vector<8x128xf32>
    %c0_36 = arith.constant 0 : index
    %c0_37 = arith.constant 0 : index
    %64 = vector.load %arg13[%c0_36, %c0_37] : memref<1x128xf32, #tpu.memory_space<vmem>>, vector<1x128xf32>
    %65 = vector.broadcast %64 : vector<1x128xf32> to vector<8x128xf32>
    %66 = arith.addf %63, %65 : vector<8x128xf32>
    %c0_38 = arith.constant 0 : index
    %c0_39 = arith.constant 0 : index
    %67 = vector.load %arg14[%c0_38, %c0_39] : memref<8x128xf32, #tpu.memory_space<vmem>>, vector<8x128xf32>
    tpu.vector_store %arg14[%c0_38, %c0_39], %66 {strides = array<i32>} : memref<8x128xf32, #tpu.memory_space<vmem>>, vector<8x128xf32>,
    return
  }
  func.func @transform_0(%arg0: i32) -> (i32, i32, i32) {
    %c0_i32 = arith.constant 0 : i32
    %c0_i32_0 = arith.constant 0 : i32
    %c0_i32_1 = arith.constant 0 : i32
    return %arg0, %c0_i32, %c0_i32_0 : i32, i32, i32
  }
  func.func @transform_1(%arg0: i32) -> (i32, i32) {
    %c0_i32 = arith.constant 0 : i32
    %c0_i32_0 = arith.constant 0 : i32
    %c0_i32_1 = arith.constant 0 : i32
    return %c0_i32, %c0_i32_0 : i32, i32
  }
  func.func @transform_2(%arg0: i32) -> (i32, i32) {
    %c0_i32 = arith.constant 0 : i32
    %c0_i32_0 = arith.constant 0 : i32
    %c0_i32_1 = arith.constant 0 : i32
    return %c0_i32, %c0_i32_0 : i32, i32
  }
  func.func @transform_3(%arg0: i32) -> (i32, i32) {
    %c0_i32 = arith.constant 0 : i32
    %c0_i32_0 = arith.constant 0 : i32
    %c0_i32_1 = arith.constant 0 : i32
    return %c0_i32, %c0_i32_0 : i32, i32
  }
  func.func @transform_4(%arg0: i32) -> (i32, i32) {
    %c0_i32 = arith.constant 0 : i32
    %c0_i32_0 = arith.constant 0 : i32
    %c0_i32_1 = arith.constant 0 : i32
    return %c0_i32, %c0_i32_0 : i32, i32
  }
  func.func @transform_5(%arg0: i32) -> (i32, i32) {
    %c0_i32 = arith.constant 0 : i32
    %c0_i32_0 = arith.constant 0 : i32
    %c0_i32_1 = arith.constant 0 : i32
    return %c0_i32, %c0_i32_0 : i32, i32
  }
  func.func @transform_6(%arg0: i32) -> (i32, i32) {
    %c0_i32 = arith.constant 0 : i32
    %c0_i32_0 = arith.constant 0 : i32
    %c0_i32_1 = arith.constant 0 : i32
    return %c0_i32, %c0_i32_0 : i32, i32
  }
  func.func @transform_7(%arg0: i32) -> (i32, i32) {
    %c0_i32 = arith.constant 0 : i32
    %c0_i32_0 = arith.constant 0 : i32
    %c0_i32_1 = arith.constant 0 : i32
    return %c0_i32, %c0_i32_0 : i32, i32
  }
  func.func @transform_8(%arg0: i32) -> (i32, i32) {
    %c0_i32 = arith.constant 0 : i32
    %c0_i32_0 = arith.constant 0 : i32
    %c0_i32_1 = arith.constant 0 : i32
    return %c0_i32, %c0_i32_0 : i32, i32
  }
  func.func @transform_9(%arg0: i32) -> (i32, i32) {
    %c0_i32 = arith.constant 0 : i32
    %c0_i32_0 = arith.constant 0 : i32
    %c0_i32_1 = arith.constant 0 : i32
    return %c0_i32, %c0_i32_0 : i32, i32
  }
  func.func @transform_10(%arg0: i32) -> (i32, i32) {
    %c0_i32 = arith.constant 0 : i32
    %c0_i32_0 = arith.constant 0 : i32
    %c0_i32_1 = arith.constant 0 : i32
    return %c0_i32, %c0_i32_0 : i32, i32
  }
  func.func @transform_11(%arg0: i32) -> (i32, i32) {
    %c0_i32 = arith.constant 0 : i32
    %c0_i32_0 = arith.constant 0 : i32
    %c0_i32_1 = arith.constant 0 : i32
    return %c0_i32, %c0_i32_0 : i32, i32
  }
  func.func @transform_12(%arg0: i32) -> (i32, i32) {
    %c0_i32 = arith.constant 0 : i32
    %c0_i32_0 = arith.constant 0 : i32
    %c0_i32_1 = arith.constant 0 : i32
    return %c0_i32, %c0_i32_0 : i32, i32
  }
  func.func @transform_13(%arg0: i32) -> (i32, i32) {
    %c0_i32 = arith.constant 0 : i32
    %c0_i32_0 = arith.constant 0 : i32
    return %arg0, %c0_i32 : i32, i32
  }
}

</mosaic_0001>

<llo_original>
// kernel: fwd.1
$region0: #{fwd.1}
  #allocation0 [shape = 'u32[]', space=smem, size = 0x4, offset = 0x4, fixed_abs, tag = 'smem constant byte address 0x4 - core index']
  #allocation1 [shape = 'u32[144,128]{1,0:T(1,128)}', space=vmem, size = 0x12000, scoped, tag = 'internal scratch']
  %s0 = inlined_call_operand.vmem [shape: f32[1,256,32], index: 0, kind: input, shape index: {}]
  %s1 = inlined_call_operand.vmem [shape: f32[160,168], index: 1, kind: input, shape index: {}]
  %s2 = inlined_call_operand.vmem [shape: f32[1,168], index: 2, kind: input, shape index: {}]
  %s3 = inlined_call_operand.vmem [shape: f32[168,84], index: 3, kind: input, shape index: {}]
  %s4 = inlined_call_operand.vmem [shape: f32[420,160], index: 4, kind: input, shape index: {}]
  %s5 = inlined_call_operand.vmem [shape: f32[1,160], index: 5, kind: input, shape index: {}]
  %s6 = inlined_call_operand.vmem [shape: f32[160,80], index: 6, kind: input, shape index: {}]
  %s7 = inlined_call_operand.vmem [shape: f32[400,128], index: 7, kind: input, shape index: {}]
  %s8 = inlined_call_operand.vmem [shape: f32[1,128], index: 8, kind: input, shape index: {}]
  %s9 = inlined_call_operand.vmem [shape: f32[128,128], index: 9, kind: input, shape index: {}]
  %s10 = inlined_call_operand.vmem [shape: f32[1,128], index: 10, kind: input, shape index: {}]
  %s11 = inlined_call_operand.vmem [shape: f32[128,128], index: 11, kind: input, shape index: {}]
  %s12 = inlined_call_operand.vmem [shape: f32[1,128], index: 12, kind: input, shape index: {}]
  %s13 = inlined_call_operand.vmem [shape: f32[8,128], index: 13, kind: output, shape index: {}]
  %s14 = sld [smem:[#allocation0]]
  $region62: #{fwd.1} parent=0
    _
  %s16 = ssub.s32 1, %s14
  %s17 = scalar_select 0, %s16, %s14
  // Predicated region
  $region2: #{fwd.1} parent=0 // pred_check
    _
  $region3: #{fwd.1} parent=0 // pred_check_branch
    %19 = sbr.rel (0) target = $region5
  $region4: #{fwd.1} parent=0 // pred_region
    _
  $region5: #{fwd.1} parent=0 // pred_fallthru
    _
  // Predicated region
  $region6: #{fwd.1} parent=0 // pred_check
    _
  $region7: #{fwd.1} parent=0 // pred_check_branch
    %21 = sbr.rel (0) target = $region9
  $region8: #{fwd.1} parent=0 // pred_region
    _
  $region9: #{fwd.1} parent=0 // pred_fallthru
    _
  // Predicated region
  $region10: #{fwd.1} parent=0 // pred_check
    _
  $region11: #{fwd.1} parent=0 // pred_check_branch
    %23 = sbr.rel (0) target = $region13
  $region12: #{fwd.1} parent=0 // pred_region
    _
  $region13: #{fwd.1} parent=0 // pred_fallthru
    _
  // Predicated region
  $region14: #{fwd.1} parent=0 // pred_check
    _
  $region15: #{fwd.1} parent=0 // pred_check_branch
    %25 = sbr.rel (0) target = $region17
  $region16: #{fwd.1} parent=0 // pred_region
    _
  $region17: #{fwd.1} parent=0 // pred_fallthru
    _
  // Predicated region
  $region18: #{fwd.1} parent=0 // pred_check
    _
  $region19: #{fwd.1} parent=0 // pred_check_branch
    %27 = sbr.rel (0) target = $region21
  $region20: #{fwd.1} parent=0 // pred_region
    _
  $region21: #{fwd.1} parent=0 // pred_fallthru
    _
  // Predicated region
  $region22: #{fwd.1} parent=0 // pred_check
    _
  $region23: #{fwd.1} parent=0 // pred_check_branch
    %29 = sbr.rel (0) target = $region25
  $region24: #{fwd.1} parent=0 // pred_region
    _
  $region25: #{fwd.1} parent=0 // pred_fallthru
    _
  // Predicated region
  $region26: #{fwd.1} parent=0 // pred_check
    _
  $region27: #{fwd.1} parent=0 // pred_check_branch
    %31 = sbr.rel (0) target = $region29
  $region28: #{fwd.1} parent=0 // pred_region
    _
  $region29: #{fwd.1} parent=0 // pred_fallthru
    _
  // Predicated region
  $region30: #{fwd.1} parent=0 // pred_check
    _
  $region31: #{fwd.1} parent=0 // pred_check_branch
    %33 = sbr.rel (0) target = $region33
  $region32: #{fwd.1} parent=0 // pred_region
    _
  $region33: #{fwd.1} parent=0 // pred_fallthru
    _
  // Predicated region
  $region34: #{fwd.1} parent=0 // pred_check
    _
  $region35: #{fwd.1} parent=0 // pred_check_branch
    %35 = sbr.rel (0) target = $region37
  $region36: #{fwd.1} parent=0 // pred_region
    _
  $region37: #{fwd.1} parent=0 // pred_fallthru
    _
  // Predicated region
  $region38: #{fwd.1} parent=0 // pred_check
    _
  $region39: #{fwd.1} parent=0 // pred_check_branch
    %37 = sbr.rel (0) target = $region41
  $region40: #{fwd.1} parent=0 // pred_region
    _
  $region41: #{fwd.1} parent=0 // pred_fallthru
    _
  // Predicated region
  $region42: #{fwd.1} parent=0 // pred_check
    _
  $region43: #{fwd.1} parent=0 // pred_check_branch
    %39 = sbr.rel (0) target = $region45
  $region44: #{fwd.1} parent=0 // pred_region
    _
  $region45: #{fwd.1} parent=0 // pred_fallthru
    _
  // Predicated region
  $region46: #{fwd.1} parent=0 // pred_check
    _
  $region47: #{fwd.1} parent=0 // pred_check_branch
    %41 = sbr.rel (0) target = $region49
  $region48: #{fwd.1} parent=0 // pred_region
    _
  $region49: #{fwd.1} parent=0 // pred_fallthru
    _
  // Predicated region
  $region50: #{fwd.1} parent=0 // pred_check
    _
  $region51: #{fwd.1} parent=0 // pred_check_branch
    %43 = sbr.rel (0) target = $region53
  $region52: #{fwd.1} parent=0 // pred_region
    _
  $region53: #{fwd.1} parent=0 // pred_fallthru
    _
  %v44 = vld [vmem:[%s0] sm:$0xff]
  %v45 = vld [vmem:[%s0 + $0x8] sm:$0xff]
  %v46 = vld [vmem:[%s0 + $0x10] sm:$0xff]
  %v47 = vld [vmem:[%s0 + $0x18] sm:$0xff]
  %v48 = vld [vmem:[%s0 + $0x20] sm:$0xff]
  %v49 = vld [vmem:[%s0 + $0x28] sm:$0xff]
  %v50 = vld [vmem:[%s0 + $0x30] sm:$0xff]
  %v51 = vld [vmem:[%s0 + $0x38] sm:$0xff]
  %v52 = vld [vmem:[%s0 + $0x40] sm:$0xff]
  %v53 = vld [vmem:[%s0 + $0x48] sm:$0xff]
  %v54 = vld [vmem:[%s0 + $0x50] sm:$0xff]
  %v55 = vld [vmem:[%s0 + $0x58] sm:$0xff]
  %v56 = vld [vmem:[%s0 + $0x60] sm:$0xff]
  %v57 = vld [vmem:[%s0 + $0x68] sm:$0xff]
  %v58 = vld [vmem:[%s0 + $0x70] sm:$0xff]
  %v59 = vld [vmem:[%s0 + $0x78] sm:$0xff]
  %v60 = vld [vmem:[%s0 + $0x80] sm:$0xff]
  %v61 = vld [vmem:[%s0 + $0x88] sm:$0xff]
  %v62 = vld [vmem:[%s0 + $0x90] sm:$0xff]
  %v63 = vld [vmem:[%s0 + $0x98] sm:$0xff]
  %v64 = vld [vmem:[%s0 + $0xa0] sm:$0xff]
  %v65 = vld [vmem:[%s0 + $0xa8] sm:$0xff]
  %v66 = vld [vmem:[%s0 + $0xb0] sm:$0xff]
  %v67 = vld [vmem:[%s0 + $0xb8] sm:$0xff]
  %v68 = vld [vmem:[%s0 + $0xc0] sm:$0xff]
  %v69 = vld [vmem:[%s0 + $0xc8] sm:$0xff]
  %v70 = vld [vmem:[%s0 + $0xd0] sm:$0xff]
  %v71 = vld [vmem:[%s0 + $0xd8] sm:$0xff]
  %v72 = vld [vmem:[%s0 + $0xe0] sm:$0xff]
  %v73 = vld [vmem:[%s0 + $0xe8] sm:$0xff]
  %v74 = vld [vmem:[%s0 + $0xf0] sm:$0xff]
  %v75 = vld [vmem:[%s0 + $0xf8] sm:$0xff]
  %104 = vrot.lane.b32.xlu0 %v45, 32
  %v105 = vpop.permute.xlu0 %104
  %106 = vrot.lane.b32.xlu0 %v46, 32
  %v107 = vpop.permute.xlu0 %106
  %108 = vrot.lane.b32.xlu0 %v47, 32
  %v109 = vpop.permute.xlu0 %108
  %110 = vrot.lane.b32.xlu0 %v48, 32
  %v111 = vpop.permute.xlu0 %110
  %112 = vrot.lane.b32.xlu0 %v49, 32
  %v113 = vpop.permute.xlu0 %112
  %114 = vrot.lane.b32.xlu0 %v50, 32
  %v115 = vpop.permute.xlu0 %114
  %116 = vrot.lane.b32.xlu0 %v51, 32
  %v117 = vpop.permute.xlu0 %116
  %118 = vrot.lane.b32.xlu0 %v52, 32
  %v119 = vpop.permute.xlu0 %118
  %120 = vrot.lane.b32.xlu0 %v53, 32
  %v121 = vpop.permute.xlu0 %120
  %122 = vrot.lane.b32.xlu0 %v54, 32
  %v123 = vpop.permute.xlu0 %122
  %124 = vrot.lane.b32.xlu0 %v55, 32
  %v125 = vpop.permute.xlu0 %124
  %126 = vrot.lane.b32.xlu0 %v56, 32
  %v127 = vpop.permute.xlu0 %126
  %128 = vrot.lane.b32.xlu0 %v57, 32
  %v129 = vpop.permute.xlu0 %128
  %130 = vrot.lane.b32.xlu0 %v58, 32
  %v131 = vpop.permute.xlu0 %130
  %132 = vrot.lane.b32.xlu0 %v59, 32
  %v133 = vpop.permute.xlu0 %132
  %134 = vrot.lane.b32.xlu0 %v60, 32
  %v135 = vpop.permute.xlu0 %134
  %136 = vrot.lane.b32.xlu0 %v61, 32
  %v137 = vpop.permute.xlu0 %136
  %138 = vrot.lane.b32.xlu0 %v62, 32
  %v139 = vpop.permute.xlu0 %138
  %140 = vrot.lane.b32.xlu0 %v63, 32
  %v141 = vpop.permute.xlu0 %140
  %142 = vrot.lane.b32.xlu0 %v64, 32
  %v143 = vpop.permute.xlu0 %142
  %144 = vrot.lane.b32.xlu0 %v65, 32
  %v145 = vpop.permute.xlu0 %144
  %146 = vrot.lane.b32.xlu0 %v66, 32
  %v147 = vpop.permute.xlu0 %146
  %148 = vrot.lane.b32.xlu0 %v67, 32
  %v149 = vpop.permute.xlu0 %148
  %150 = vrot.lane.b32.xlu0 %v68, 32
  %v151 = vpop.permute.xlu0 %150
  %152 = vrot.lane.b32.xlu0 %v69, 32
  %v153 = vpop.permute.xlu0 %152
  %154 = vrot.lane.b32.xlu0 %v70, 32
  %v155 = vpop.permute.xlu0 %154
  %156 = vrot.lane.b32.xlu0 %v71, 32
  %v157 = vpop.permute.xlu0 %156
  %158 = vrot.lane.b32.xlu0 %v72, 32
  %v159 = vpop.permute.xlu0 %158
  %189 = vrot.lane.b32.xlu0 %v46, 64
  %v190 = vpop.permute.xlu0 %189
  %191 = vrot.lane.b32.xlu0 %v47, 64
  %v192 = vpop.permute.xlu0 %191
  %193 = vrot.lane.b32.xlu0 %v48, 64
  %v194 = vpop.permute.xlu0 %193
  %195 = vrot.lane.b32.xlu0 %v49, 64
  %v196 = vpop.permute.xlu0 %195
  %197 = vrot.lane.b32.xlu0 %v50, 64
  %v198 = vpop.permute.xlu0 %197
  %199 = vrot.lane.b32.xlu0 %v51, 64
  %v200 = vpop.permute.xlu0 %199
  %201 = vrot.lane.b32.xlu0 %v52, 64
  %v202 = vpop.permute.xlu0 %201
  %203 = vrot.lane.b32.xlu0 %v53, 64
  %v204 = vpop.permute.xlu0 %203
  %205 = vrot.lane.b32.xlu0 %v54, 64
  %v206 = vpop.permute.xlu0 %205
  %207 = vrot.lane.b32.xlu0 %v55, 64
  %v208 = vpop.permute.xlu0 %207
  %209 = vrot.lane.b32.xlu0 %v56, 64
  %v210 = vpop.permute.xlu0 %209
  %211 = vrot.lane.b32.xlu0 %v57, 64
  %v212 = vpop.permute.xlu0 %211
  %213 = vrot.lane.b32.xlu0 %v58, 64
  %v214 = vpop.permute.xlu0 %213
  %215 = vrot.lane.b32.xlu0 %v59, 64
  %v216 = vpop.permute.xlu0 %215
  %217 = vrot.lane.b32.xlu0 %v60, 64
  %v218 = vpop.permute.xlu0 %217
  %219 = vrot.lane.b32.xlu0 %v61, 64
  %v220 = vpop.permute.xlu0 %219
  %221 = vrot.lane.b32.xlu0 %v62, 64
  %v222 = vpop.permute.xlu0 %221
  %223 = vrot.lane.b32.xlu0 %v63, 64
  %v224 = vpop.permute.xlu0 %223
  %225 = vrot.lane.b32.xlu0 %v64, 64
  %v226 = vpop.permute.xlu0 %225
  %227 = vrot.lane.b32.xlu0 %v65, 64
  %v228 = vpop.permute.xlu0 %227
  %229 = vrot.lane.b32.xlu0 %v66, 64
  %v230 = vpop.permute.xlu0 %229
  %231 = vrot.lane.b32.xlu0 %v67, 64
  %v232 = vpop.permute.xlu0 %231
  %233 = vrot.lane.b32.xlu0 %v68, 64
  %v234 = vpop.permute.xlu0 %233
  %235 = vrot.lane.b32.xlu0 %v69, 64
  %v236 = vpop.permute.xlu0 %235
  %237 = vrot.lane.b32.xlu0 %v70, 64
  %v238 = vpop.permute.xlu0 %237
  %239 = vrot.lane.b32.xlu0 %v71, 64
  %v240 = vpop.permute.xlu0 %239
  %241 = vrot.lane.b32.xlu0 %v72, 64
  %v242 = vpop.permute.xlu0 %241
  %243 = vrot.lane.b32.xlu0 %v73, 64
  %v244 = vpop.permute.xlu0 %243
  %274 = vrot.lane.b32.xlu0 %v47, 96
  %v275 = vpop.permute.xlu0 %274
  %276 = vrot.lane.b32.xlu0 %v48, 96
  %v277 = vpop.permute.xlu0 %276
  %278 = vrot.lane.b32.xlu0 %v49, 96
  %v279 = vpop.permute.xlu0 %278
  %280 = vrot.lane.b32.xlu0 %v50, 96
  %v281 = vpop.permute.xlu0 %280
  %282 = vrot.lane.b32.xlu0 %v51, 96
  %v283 = vpop.permute.xlu0 %282
  %284 = vrot.lane.b32.xlu0 %v52, 96
  %v285 = vpop.permute.xlu0 %284
  %286 = vrot.lane.b32.xlu0 %v53, 96
  %v287 = vpop.permute.xlu0 %286
  %288 = vrot.lane.b32.xlu0 %v54, 96
  %v289 = vpop.permute.xlu0 %288
  %290 = vrot.lane.b32.xlu0 %v55, 96
  %v291 = vpop.permute.xlu0 %290
  %292 = vrot.lane.b32.xlu0 %v56, 96
  %v293 = vpop.permute.xlu0 %292
  %294 = vrot.lane.b32.xlu0 %v57, 96
  %v295 = vpop.permute.xlu0 %294
  %296 = vrot.lane.b32.xlu0 %v58, 96
  %v297 = vpop.permute.xlu0 %296
  %298 = vrot.lane.b32.xlu0 %v59, 96
  %v299 = vpop.permute.xlu0 %298
  %300 = vrot.lane.b32.xlu0 %v60, 96
  %v301 = vpop.permute.xlu0 %300
  %302 = vrot.lane.b32.xlu0 %v61, 96
  %v303 = vpop.permute.xlu0 %302
  %304 = vrot.lane.b32.xlu0 %v62, 96
  %v305 = vpop.permute.xlu0 %304
  %306 = vrot.lane.b32.xlu0 %v63, 96
  %v307 = vpop.permute.xlu0 %306
  %308 = vrot.lane.b32.xlu0 %v64, 96
  %v309 = vpop.permute.xlu0 %308
  %310 = vrot.lane.b32.xlu0 %v65, 96
  %v311 = vpop.permute.xlu0 %310
  %312 = vrot.lane.b32.xlu0 %v66, 96
  %v313 = vpop.permute.xlu0 %312
  %314 = vrot.lane.b32.xlu0 %v67, 96
  %v315 = vpop.permute.xlu0 %314
  %316 = vrot.lane.b32.xlu0 %v68, 96
  %v317 = vpop.permute.xlu0 %316
  %318 = vrot.lane.b32.xlu0 %v69, 96
  %v319 = vpop.permute.xlu0 %318
  %320 = vrot.lane.b32.xlu0 %v70, 96
  %v321 = vpop.permute.xlu0 %320
  %322 = vrot.lane.b32.xlu0 %v71, 96
  %v323 = vpop.permute.xlu0 %322
  %324 = vrot.lane.b32.xlu0 %v72, 96
  %v325 = vpop.permute.xlu0 %324
  %326 = vrot.lane.b32.xlu0 %v73, 96
  %v327 = vpop.permute.xlu0 %326
  %328 = vrot.lane.b32.xlu0 %v74, 96
  %v329 = vpop.permute.xlu0 %328
  %vm358 = vcmask 261120
  %v359 = vsel %vm358, %v44, %v105
  %v360 = vsel %vm358, %v45, %v107
  %v361 = vsel %vm358, %v46, %v109
  %v362 = vsel %vm358, %v47, %v111
  %v363 = vsel %vm358, %v48, %v113
  %v364 = vsel %vm358, %v49, %v115
  %v365 = vsel %vm358, %v50, %v117
  %v366 = vsel %vm358, %v51, %v119
  %v367 = vsel %vm358, %v52, %v121
  %v368 = vsel %vm358, %v53, %v123
  %v369 = vsel %vm358, %v54, %v125
  %v370 = vsel %vm358, %v55, %v127
  %v371 = vsel %vm358, %v56, %v129
  %v372 = vsel %vm358, %v57, %v131
  %v373 = vsel %vm358, %v58, %v133
  %v374 = vsel %vm358, %v59, %v135
  %v375 = vsel %vm358, %v60, %v137
  %v376 = vsel %vm358, %v61, %v139
  %v377 = vsel %vm358, %v62, %v141
  %v378 = vsel %vm358, %v63, %v143
  %v379 = vsel %vm358, %v64, %v145
  %v380 = vsel %vm358, %v65, %v147
  %v381 = vsel %vm358, %v66, %v149
  %v382 = vsel %vm358, %v67, %v151
  %v383 = vsel %vm358, %v68, %v153
  %v384 = vsel %vm358, %v69, %v155
  %v385 = vsel %vm358, %v70, %v157
  %v386 = vsel %vm358, %v71, %v159
  %vm387 = vcmask 523264
  %v388 = vsel %vm387, %v359, %v190
  %v389 = vsel %vm387, %v360, %v192
  %v390 = vsel %vm387, %v361, %v194
  %v391 = vsel %vm387, %v362, %v196
  %v392 = vsel %vm387, %v363, %v198
  %v393 = vsel %vm387, %v364, %v200
  %v394 = vsel %vm387, %v365, %v202
  %v395 = vsel %vm387, %v366, %v204
  %v396 = vsel %vm387, %v367, %v206
  %v397 = vsel %vm387, %v368, %v208
  %v398 = vsel %vm387, %v369, %v210
  %v399 = vsel %vm387, %v370, %v212
  %v400 = vsel %vm387, %v371, %v214
  %v401 = vsel %vm387, %v372, %v216
  %v402 = vsel %vm387, %v373, %v218
  %v403 = vsel %vm387, %v374, %v220
  %v404 = vsel %vm387, %v375, %v222
  %v405 = vsel %vm387, %v376, %v224
  %v406 = vsel %vm387, %v377, %v226
  %v407 = vsel %vm387, %v378, %v228
  %v408 = vsel %vm387, %v379, %v230
  %v409 = vsel %vm387, %v380, %v232
  %v410 = vsel %vm387, %v381, %v234
  %v411 = vsel %vm387, %v382, %v236
  %v412 = vsel %vm387, %v383, %v238
  %v413 = vsel %vm387, %v384, %v240
  %v414 = vsel %vm387, %v385, %v242
  %v415 = vsel %vm387, %v386, %v244
  %vm416 = vcmask 785408
  %v417 = vsel %vm416, %v388, %v275
  %v418 = vsel %vm416, %v389, %v277
  %v419 = vsel %vm416, %v390, %v279
  %v420 = vsel %vm416, %v391, %v281
  %v421 = vsel %vm416, %v392, %v283
  %v422 = vsel %vm416, %v393, %v285
  %v423 = vsel %vm416, %v394, %v287
  %v424 = vsel %vm416, %v395, %v289
  %v425 = vsel %vm416, %v396, %v291
  %v426 = vsel %vm416, %v397, %v293
  %v427 = vsel %vm416, %v398, %v295
  %v428 = vsel %vm416, %v399, %v297
  %v429 = vsel %vm416, %v400, %v299
  %v430 = vsel %vm416, %v401, %v301
  %v431 = vsel %vm416, %v402, %v303
  %v432 = vsel %vm416, %v403, %v305
  %v433 = vsel %vm416, %v404, %v307
  %v434 = vsel %vm416, %v405, %v309
  %v435 = vsel %vm416, %v406, %v311
  %v436 = vsel %vm416, %v407, %v313
  %v437 = vsel %vm416, %v408, %v315
  %v438 = vsel %vm416, %v409, %v317
  %v439 = vsel %vm416, %v410, %v319
  %v440 = vsel %vm416, %v411, %v321
  %v441 = vsel %vm416, %v412, %v323
  %v442 = vsel %vm416, %v413, %v325
  %v443 = vsel %vm416, %v414, %v327
  %v444 = vsel %vm416, %v415, %v329
  %v445 = vld [vmem:[%s1] sm:$0xff]
  %v446 = vld [vmem:[%s1 + $0x8] sm:$0xff]
  %v447 = vld [vmem:[%s1 + $0x10] sm:$0xff]
  %v448 = vld [vmem:[%s1 + $0x18] sm:$0xff]
  %v449 = vld [vmem:[%s1 + $0x20] sm:$0xff]
  %v450 = vld [vmem:[%s1 + $0x28] sm:$0xff]
  %v451 = vld [vmem:[%s1 + $0x30] sm:$0xff]
  %v452 = vld [vmem:[%s1 + $0x38] sm:$0xff]
  %v453 = vld [vmem:[%s1 + $0x40] sm:$0xff]
  %v454 = vld [vmem:[%s1 + $0x48] sm:$0xff]
  %v455 = vld [vmem:[%s1 + $0x50] sm:$0xff]
  %v456 = vld [vmem:[%s1 + $0x58] sm:$0xff]
  %v457 = vld [vmem:[%s1 + $0x60] sm:$0xff]
  %v458 = vld [vmem:[%s1 + $0x68] sm:$0xff]
  %v459 = vld [vmem:[%s1 + $0x70] sm:$0xff]
  %v460 = vld [vmem:[%s1 + $0x78] sm:$0xff]
  %v461 = vld [vmem:[%s1 + $0x80] sm:$0xff]
  %v462 = vld [vmem:[%s1 + $0x88] sm:$0xff]
  %v463 = vld [vmem:[%s1 + $0x90] sm:$0xff]
  %v464 = vld [vmem:[%s1 + $0x98] sm:$0xff]
  %v465 = vld [vmem:[%s1 + $0xa0] sm:$0xff]
  %v466 = vld [vmem:[%s1 + $0xa8] sm:$0xff]
  %v467 = vld [vmem:[%s1 + $0xb0] sm:$0xff]
  %v468 = vld [vmem:[%s1 + $0xb8] sm:$0xff]
  %v469 = vld [vmem:[%s1 + $0xc0] sm:$0xff]
  %v470 = vld [vmem:[%s1 + $0xc8] sm:$0xff]
  %v471 = vld [vmem:[%s1 + $0xd0] sm:$0xff]
  %v472 = vld [vmem:[%s1 + $0xd8] sm:$0xff]
  %v473 = vld [vmem:[%s1 + $0xe0] sm:$0xff]
  %v474 = vld [vmem:[%s1 + $0xe8] sm:$0xff]
  %v475 = vld [vmem:[%s1 + $0xf0] sm:$0xff]
  %v476 = vld [vmem:[%s1 + $0xf8] sm:$0xff]
  %v477 = vld [vmem:[%s1 + $0x100] sm:$0xff]
  %v478 = vld [vmem:[%s1 + $0x108] sm:$0xff]
  %v479 = vld [vmem:[%s1 + $0x110] sm:$0xff]
  %v480 = vld [vmem:[%s1 + $0x118] sm:$0xff]
  %v481 = vld [vmem:[%s1 + $0x120] sm:$0xff]
  %v482 = vld [vmem:[%s1 + $0x128] sm:$0xff]
  %v483 = vld [vmem:[%s1 + $0x130] sm:$0xff]
  %v484 = vld [vmem:[%s1 + $0x138] sm:$0xff]
  %v485 = vld [vmem:[%s2] sm:$0x3]
  %v487 = vlaneseq
  %v488 = vshrl.u32 %v487, 7
  %v489 = vsub.s32 0, %v488
  %v490 = vrot.slane %v485, %v489
  %v491 = vlaneseq
  %v492 = vshrl.u32 %v491, 7
  %v493 = vsub.s32 1, %v492
  %v494 = vrot.slane %v485, %v493
  %v497 = vsel %vm358, %v48, 0
  %v499 = vsel %vm358, %v49, 0
  %v501 = vsel %vm358, %v50, 0
  %v503 = vsel %vm358, %v51, 0
  %v505 = vsel %vm358, %v52, 0
  %v507 = vsel %vm358, %v53, 0
  %v509 = vsel %vm358, %v54, 0
  %v511 = vsel %vm358, %v55, 0
  %v513 = vsel %vm358, %v56, 0
  %v515 = vsel %vm358, %v57, 0
  %v517 = vsel %vm358, %v58, 0
  %v519 = vsel %vm358, %v59, 0
  %v521 = vsel %vm358, %v60, 0
  %v523 = vsel %vm358, %v61, 0
  %v525 = vsel %vm358, %v62, 0
  %v527 = vsel %vm358, %v63, 0
  %v529 = vsel %vm358, %v64, 0
  %v531 = vsel %vm358, %v65, 0
  %v533 = vsel %vm358, %v66, 0
  %v535 = vsel %vm358, %v67, 0
  %v537 = vsel %vm358, %v68, 0
  %v539 = vsel %vm358, %v69, 0
  %v541 = vsel %vm358, %v70, 0
  %v543 = vsel %vm358, %v71, 0
  %v545 = vsel %vm358, %v72, 0
  %v547 = vsel %vm358, %v73, 0
  %v549 = vsel %vm358, %v74, 0
  %v552 = vsel %vm358, %v75, 0
  %554 = vmatprep.subr.mxu0 %v446
  %555 = vmatpush1.msra.mxu0 %v445
  %556 = vmatprep.subr.mxu0 %v448
  %557 = vmatpush1.msra.mxu0 %v447
  %558 = vmatprep.subr.mxu0 %v450
  %559 = vmatpush1.msra.mxu0 %v449
  %560 = vmatprep.subr.mxu0 %v452
  %561 = vmatpush1.msra.mxu0 %v451
  %562 = vmatprep.subr.mxu0 %v454
  %563 = vmatpush1.msra.mxu0 %v453
  %564 = vmatprep.subr.mxu0 %v456
  %565 = vmatpush1.msra.mxu0 %v455
  %566 = vmatprep.subr.mxu0 %v458
  %567 = vmatpush1.msra.mxu0 %v457
  %568 = vmatprep.subr.mxu0 %v460
  %569 = vmatpush1.msra.mxu0 %v459
  %570 = vmatprep.subr.mxu0 %v462
  %571 = vmatpush1.msra.mxu0 %v461
  %572 = vmatprep.subr.mxu0 %v464
  %573 = vmatpush1.msra.mxu0 %v463
  %574 = vmatprep.subr.mxu0 %v466
  %575 = vmatpush1.msra.mxu0 %v465
  %576 = vmatprep.subr.mxu0 %v468
  %577 = vmatpush1.msra.mxu0 %v467
  %578 = vmatprep.subr.mxu0 %v470
  %579 = vmatpush1.msra.mxu0 %v469
  %580 = vmatprep.subr.mxu0 %v472
  %581 = vmatpush1.msra.mxu0 %v471
  %582 = vmatprep.subr.mxu0 %v474
  %583 = vmatpush1.msra.mxu0 %v473
  %584 = vmatprep.subr.mxu0 %v476
  %585 = vmatpush1.msra.mxu0 %v475
  %586 = vmatprep.subr.mxu0 %v478
  %587 = vmatpush1.msra.mxu0 %v477
  %588 = vmatprep.subr.mxu0 %v480
  %589 = vmatpush1.msra.mxu0 %v479
  %590 = vmatprep.subr.mxu0 %v482
  %591 = vmatpush1.msra.mxu0 %v481
  %592 = vmatprep.subr.mxu0 %v484
  %593 = vmatpush1.msra.mxu0 %v483
  %594 = vmatprep.subr.mxu0 0.0
  %595 = vmatpush1.msra.mxu0 0.0
  %596 = vmatprep.subr.mxu0 0.0
  %597 = vmatpush1.msra.mxu0 0.0
  %598 = vmatprep.subr.mxu0 0.0
  %599 = vmatpush1.msra.mxu0 0.0
  %600 = vmatprep.subr.mxu0 0.0
  %601 = vmatpush1.msra.mxu0 0.0
  %602 = vmatprep.subr.mxu0 0.0
  %603 = vmatpush1.msra.mxu0 0.0
  %604 = vmatprep.subr.mxu0 0.0
  %605 = vmatpush1.msra.mxu0 0.0
  %606 = vmatprep.subr.mxu0 0.0
  %607 = vmatpush1.msra.mxu0 0.0
  %608 = vmatprep.subr.mxu0 0.0
  %609 = vmatpush1.msra.mxu0 0.0
  %610 = vmatprep.subr.mxu0 0.0
  %611 = vmatpush1.msra.mxu0 0.0
  %612 = vmatprep.subr.mxu0 0.0
  %613 = vmatpush1.msra.mxu0 0.0
  %614 = vmatprep.subr.mxu0 0.0
  %615 = vmatpush1.msra.mxu0 0.0
  %616 = vmatprep.subr.mxu0 0.0
  %617 = vmatpush1.msra.mxu0 0.0
  %618 = vmatprep.mubr.f32.mxu0 %v497
  %619 = vmatmul.mubr.f32.gmra.mrb[0].mxu0 %v417
  %v620 = vpop.f32.mrb[0].mxu0
  %v621 = vadd.f32 %v490, %v620
  %v622 = vpop.f32.mrb[0].mxu0
  %v623 = vadd.f32 %v494, %v622
  %624 = vmatprep.mubr.f32.mxu0 %v499
  %625 = vmatmul.mubr.f32.gmra.mrb[0].mxu0 %v418
  %v626 = vpop.f32.mrb[0].mxu0
  %v627 = vadd.f32 %v490, %v626
  %v628 = vpop.f32.mrb[0].mxu0
  %v629 = vadd.f32 %v494, %v628
  %630 = vmatprep.mubr.f32.mxu0 %v501
  %631 = vmatmul.mubr.f32.gmra.mrb[0].mxu0 %v419
  %v632 = vpop.f32.mrb[0].mxu0
  %v633 = vadd.f32 %v490, %v632
  %v634 = vpop.f32.mrb[0].mxu0
  %v635 = vadd.f32 %v494, %v634
  %636 = vmatprep.mubr.f32.mxu0 %v503
  %637 = vmatmul.mubr.f32.gmra.mrb[0].mxu0 %v420
  %v638 = vpop.f32.mrb[0].mxu0
  %v639 = vadd.f32 %v490, %v638
  %v640 = vpop.f32.mrb[0].mxu0
  %v641 = vadd.f32 %v494, %v640
  %642 = vmatprep.mubr.f32.mxu0 %v505
  %643 = vmatmul.mubr.f32.gmra.mrb[0].mxu0 %v421
  %v644 = vpop.f32.mrb[0].mxu0
  %v645 = vadd.f32 %v490, %v644
  %v646 = vpop.f32.mrb[0].mxu0
  %v647 = vadd.f32 %v494, %v646
  %648 = vmatprep.mubr.f32.mxu0 %v507
  %649 = vmatmul.mubr.f32.gmra.mrb[0].mxu0 %v422
  %v650 = vpop.f32.mrb[0].mxu0
  %v651 = vadd.f32 %v490, %v650
  %v652 = vpop.f32.mrb[0].mxu0
  %v653 = vadd.f32 %v494, %v652
  %654 = vmatprep.mubr.f32.mxu0 %v509
  %655 = vmatmul.mubr.f32.gmra.mrb[0].mxu0 %v423
  %v656 = vpop.f32.mrb[0].mxu0
  %v657 = vadd.f32 %v490, %v656
  %v658 = vpop.f32.mrb[0].mxu0
  %v659 = vadd.f32 %v494, %v658
  %660 = vmatprep.mubr.f32.mxu0 %v511
  %661 = vmatmul.mubr.f32.gmra.mrb[0].mxu0 %v424
  %v662 = vpop.f32.mrb[0].mxu0
  %v663 = vadd.f32 %v490, %v662
  %v664 = vpop.f32.mrb[0].mxu0
  %v665 = vadd.f32 %v494, %v664
  %666 = vmatprep.mubr.f32.mxu0 %v513
  %667 = vmatmul.mubr.f32.gmra.mrb[0].mxu0 %v425
  %v668 = vpop.f32.mrb[0].mxu0
  %v669 = vadd.f32 %v490, %v668
  %v670 = vpop.f32.mrb[0].mxu0
  %v671 = vadd.f32 %v494, %v670
  %672 = vmatprep.mubr.f32.mxu0 %v515
  %673 = vmatmul.mubr.f32.gmra.mrb[0].mxu0 %v426
  %v674 = vpop.f32.mrb[0].mxu0
  %v675 = vadd.f32 %v490, %v674
  %v676 = vpop.f32.mrb[0].mxu0
  %v677 = vadd.f32 %v494, %v676
  %678 = vmatprep.mubr.f32.mxu0 %v517
  %679 = vmatmul.mubr.f32.gmra.mrb[0].mxu0 %v427
  %v680 = vpop.f32.mrb[0].mxu0
  %v681 = vadd.f32 %v490, %v680
  %v682 = vpop.f32.mrb[0].mxu0
  %v683 = vadd.f32 %v494, %v682
  %684 = vmatprep.mubr.f32.mxu0 %v519
  %685 = vmatmul.mubr.f32.gmra.mrb[0].mxu0 %v428
  %v686 = vpop.f32.mrb[0].mxu0
  %v687 = vadd.f32 %v490, %v686
  %v688 = vpop.f32.mrb[0].mxu0
  %v689 = vadd.f32 %v494, %v688
  %690 = vmatprep.mubr.f32.mxu0 %v521
  %691 = vmatmul.mubr.f32.gmra.mrb[0].mxu0 %v429
  %v692 = vpop.f32.mrb[0].mxu0
  %v693 = vadd.f32 %v490, %v692
  %v694 = vpop.f32.mrb[0].mxu0
  %v695 = vadd.f32 %v494, %v694
  %696 = vmatprep.mubr.f32.mxu0 %v523
  %697 = vmatmul.mubr.f32.gmra.mrb[0].mxu0 %v430
  %v698 = vpop.f32.mrb[0].mxu0
  %v699 = vadd.f32 %v490, %v698
  %v700 = vpop.f32.mrb[0].mxu0
  %v701 = vadd.f32 %v494, %v700
  %702 = vmatprep.mubr.f32.mxu0 %v525
  %703 = vmatmul.mubr.f32.gmra.mrb[0].mxu0 %v431
  %v704 = vpop.f32.mrb[0].mxu0
  %v705 = vadd.f32 %v490, %v704
  %v706 = vpop.f32.mrb[0].mxu0
  %v707 = vadd.f32 %v494, %v706
  %708 = vmatprep.mubr.f32.mxu0 %v527
  %709 = vmatmul.mubr.f32.gmra.mrb[0].mxu0 %v432
  %v710 = vpop.f32.mrb[0].mxu0
  %v711 = vadd.f32 %v490, %v710
  %v712 = vpop.f32.mrb[0].mxu0
  %v713 = vadd.f32 %v494, %v712
  %714 = vmatprep.mubr.f32.mxu0 %v529
  %715 = vmatmul.mubr.f32.gmra.mrb[0].mxu0 %v433
  %v716 = vpop.f32.mrb[0].mxu0
  %v717 = vadd.f32 %v490, %v716
  %v718 = vpop.f32.mrb[0].mxu0
  %v719 = vadd.f32 %v494, %v718
  %720 = vmatprep.mubr.f32.mxu0 %v531
  %721 = vmatmul.mubr.f32.gmra.mrb[0].mxu0 %v434
  %v722 = vpop.f32.mrb[0].mxu0
  %v723 = vadd.f32 %v490, %v722
  %v724 = vpop.f32.mrb[0].mxu0
  %v725 = vadd.f32 %v494, %v724
  %726 = vmatprep.mubr.f32.mxu0 %v533
  %727 = vmatmul.mubr.f32.gmra.mrb[0].mxu0 %v435
  %v728 = vpop.f32.mrb[0].mxu0
  %v729 = vadd.f32 %v490, %v728
  %v730 = vpop.f32.mrb[0].mxu0
  %v731 = vadd.f32 %v494, %v730
  %732 = vmatprep.mubr.f32.mxu0 %v535
  %733 = vmatmul.mubr.f32.gmra.mrb[0].mxu0 %v436
  %v734 = vpop.f32.mrb[0].mxu0
  %v735 = vadd.f32 %v490, %v734
  %v736 = vpop.f32.mrb[0].mxu0
  %v737 = vadd.f32 %v494, %v736
  %738 = vmatprep.mubr.f32.mxu0 %v537
  %739 = vmatmul.mubr.f32.gmra.mrb[0].mxu0 %v437
  %v740 = vpop.f32.mrb[0].mxu0
  %v741 = vadd.f32 %v490, %v740
  %v742 = vpop.f32.mrb[0].mxu0
  %v743 = vadd.f32 %v494, %v742
  %744 = vmatprep.mubr.f32.mxu0 %v539
  %745 = vmatmul.mubr.f32.gmra.mrb[0].mxu0 %v438
  %v746 = vpop.f32.mrb[0].mxu0
  %v747 = vadd.f32 %v490, %v746
  %v748 = vpop.f32.mrb[0].mxu0
  %v749 = vadd.f32 %v494, %v748
  %750 = vmatprep.mubr.f32.mxu0 %v541
  %751 = vmatmul.mubr.f32.gmra.mrb[0].mxu0 %v439
  %v752 = vpop.f32.mrb[0].mxu0
  %v753 = vadd.f32 %v490, %v752
  %v754 = vpop.f32.mrb[0].mxu0
  %v755 = vadd.f32 %v494, %v754
  %756 = vmatprep.mubr.f32.mxu0 %v543
  %757 = vmatmul.mubr.f32.gmra.mrb[0].mxu0 %v440
  %v758 = vpop.f32.mrb[0].mxu0
  %v759 = vadd.f32 %v490, %v758
  %v760 = vpop.f32.mrb[0].mxu0
  %v761 = vadd.f32 %v494, %v760
  %762 = vmatprep.mubr.f32.mxu0 %v545
  %763 = vmatmul.mubr.f32.gmra.mrb[0].mxu0 %v441
  %v764 = vpop.f32.mrb[0].mxu0
  %v765 = vadd.f32 %v490, %v764
  %v766 = vpop.f32.mrb[0].mxu0
  %v767 = vadd.f32 %v494, %v766
  %768 = vmatprep.mubr.f32.mxu0 %v547
  %769 = vmatmul.mubr.f32.gmra.mrb[0].mxu0 %v442
  %v770 = vpop.f32.mrb[0].mxu0
  %v771 = vadd.f32 %v490, %v770
  %v772 = vpop.f32.mrb[0].mxu0
  %v773 = vadd.f32 %v494, %v772
  %774 = vmatprep.mubr.f32.mxu0 %v549
  %775 = vmatmul.mubr.f32.gmra.mrb[0].mxu0 %v443
  %v776 = vpop.f32.mrb[0].mxu0
  %v777 = vadd.f32 %v490, %v776
  %v778 = vpop.f32.mrb[0].mxu0
  %v779 = vadd.f32 %v494, %v778
  %780 = vmatprep.mubr.f32.mxu0 %v552
  %781 = vmatmul.mubr.f32.gmra.mrb[0].mxu0 %v444
  %v782 = vpop.f32.mrb[0].mxu0
  %v783 = vadd.f32 %v490, %v782
  %v784 = vpop.f32.mrb[0].mxu0
  %v785 = vadd.f32 %v494, %v784
  %786 = vdwg.mxu0
  %v787 = vmax.f32 %v621, 0.0
  %v788 = vmax.f32 %v623, 0.0
  %v789 = vmax.f32 %v627, 0.0
  %v790 = vmax.f32 %v629, 0.0
  %v791 = vmax.f32 %v633, 0.0
  %v792 = vmax.f32 %v635, 0.0
  %v793 = vmax.f32 %v639, 0.0
  %v794 = vmax.f32 %v641, 0.0
  %v795 = vmax.f32 %v645, 0.0
  %v796 = vmax.f32 %v647, 0.0
  %v797 = vmax.f32 %v651, 0.0
  %v798 = vmax.f32 %v653, 0.0
  %v799 = vmax.f32 %v657, 0.0
  %v800 = vmax.f32 %v659, 0.0
  %v801 = vmax.f32 %v663, 0.0
  %v802 = vmax.f32 %v665, 0.0
  %v803 = vmax.f32 %v669, 0.0
  %v804 = vmax.f32 %v671, 0.0
  %v805 = vmax.f32 %v675, 0.0
  %v806 = vmax.f32 %v677, 0.0
  %v807 = vmax.f32 %v681, 0.0
  %v808 = vmax.f32 %v683, 0.0
  %v809 = vmax.f32 %v687, 0.0
  %v810 = vmax.f32 %v689, 0.0
  %v811 = vmax.f32 %v693, 0.0
  %v812 = vmax.f32 %v695, 0.0
  %v813 = vmax.f32 %v699, 0.0
  %v814 = vmax.f32 %v701, 0.0
  %v815 = vmax.f32 %v705, 0.0
  %v816 = vmax.f32 %v707, 0.0
  %v817 = vmax.f32 %v711, 0.0
  %v818 = vmax.f32 %v713, 0.0
  %v819 = vmax.f32 %v717, 0.0
  %v820 = vmax.f32 %v719, 0.0
  %v821 = vmax.f32 %v723, 0.0
  %v822 = vmax.f32 %v725, 0.0
  %v823 = vmax.f32 %v729, 0.0
  %v824 = vmax.f32 %v731, 0.0
  %v825 = vmax.f32 %v735, 0.0
  %v826 = vmax.f32 %v737, 0.0
  %v827 = vmax.f32 %v741, 0.0
  %v828 = vmax.f32 %v743, 0.0
  %v829 = vmax.f32 %v747, 0.0
  %v830 = vmax.f32 %v749, 0.0
  %v831 = vmax.f32 %v753, 0.0
  %v832 = vmax.f32 %v755, 0.0
  %v833 = vmax.f32 %v759, 0.0
  %v834 = vmax.f32 %v761, 0.0
  %v835 = vmax.f32 %v765, 0.0
  %v836 = vmax.f32 %v767, 0.0
  %v837 = vmax.f32 %v771, 0.0
  %v838 = vmax.f32 %v773, 0.0
  %v839 = vmax.f32 %v777, 0.0
  %v840 = vmax.f32 %v779, 0.0
  %v841 = vmax.f32 %v783, 0.0
  %v842 = vmax.f32 %v785, 0.0
  %v843 = vld [vmem:[%s3] sm:$0xff]
  %v844 = vld [vmem:[%s3 + $0x8] sm:$0xff]
  %v845 = vld [vmem:[%s3 + $0x10] sm:$0xff]
  %v846 = vld [vmem:[%s3 + $0x18] sm:$0xff]
  %v847 = vld [vmem:[%s3 + $0x20] sm:$0xff]
  %v848 = vld [vmem:[%s3 + $0x28] sm:$0xff]
  %v849 = vld [vmem:[%s3 + $0x30] sm:$0xff]
  %v850 = vld [vmem:[%s3 + $0x38] sm:$0xff]
  %v851 = vld [vmem:[%s3 + $0x40] sm:$0xff]
  %v852 = vld [vmem:[%s3 + $0x48] sm:$0xff]
  %v853 = vld [vmem:[%s3 + $0x50] sm:$0xff]
  %v854 = vld [vmem:[%s3 + $0x58] sm:$0xff]
  %v855 = vld [vmem:[%s3 + $0x60] sm:$0xff]
  %v856 = vld [vmem:[%s3 + $0x68] sm:$0xff]
  %v857 = vld [vmem:[%s3 + $0x70] sm:$0xff]
  %v858 = vld [vmem:[%s3 + $0x78] sm:$0xff]
  %v859 = vld [vmem:[%s3 + $0x80] sm:$0xff]
  %v860 = vld [vmem:[%s3 + $0x88] sm:$0xff]
  %v861 = vld [vmem:[%s3 + $0x90] sm:$0xff]
  %v862 = vld [vmem:[%s3 + $0x98] sm:$0xff]
  %v863 = vld [vmem:[%s3 + $0xa0] sm:$0xff]
  %vm864 = vcmask 326656
  %v866 = vsel %vm864, %v788, 0
  %v869 = vsel %vm864, %v790, 0
  %v872 = vsel %vm864, %v792, 0
  %v875 = vsel %vm864, %v794, 0
  %v878 = vsel %vm864, %v796, 0
  %v881 = vsel %vm864, %v798, 0
  %v884 = vsel %vm864, %v800, 0
  %v887 = vsel %vm864, %v802, 0
  %v890 = vsel %vm864, %v804, 0
  %v893 = vsel %vm864, %v806, 0
  %v896 = vsel %vm864, %v808, 0
  %v899 = vsel %vm864, %v810, 0
  %v902 = vsel %vm864, %v812, 0
  %v905 = vsel %vm864, %v814, 0
  %v908 = vsel %vm864, %v816, 0
  %v911 = vsel %vm864, %v818, 0
  %v914 = vsel %vm864, %v820, 0
  %v917 = vsel %vm864, %v822, 0
  %v920 = vsel %vm864, %v824, 0
  %v923 = vsel %vm864, %v826, 0
  %v926 = vsel %vm864, %v828, 0
  %v929 = vsel %vm864, %v830, 0
  %v932 = vsel %vm864, %v832, 0
  %v935 = vsel %vm864, %v834, 0
  %v938 = vsel %vm864, %v836, 0
  %v941 = vsel %vm864, %v838, 0
  %v944 = vsel %vm864, %v840, 0
  %v947 = vsel %vm864, %v842, 0
  %949 = vmatprep.subr.mxu0 0.0
  %950 = vmatpush1.msra.mxu0 %v843
  %951 = vmatprep.subr.mxu0 0.0
  %952 = vmatpush1.msra.mxu0 %v844
  %953 = vmatprep.subr.mxu0 0.0
  %954 = vmatpush1.msra.mxu0 %v845
  %955 = vmatprep.subr.mxu0 0.0
  %956 = vmatpush1.msra.mxu0 %v846
  %957 = vmatprep.subr.mxu0 0.0
  %958 = vmatpush1.msra.mxu0 %v847
  %959 = vmatprep.subr.mxu0 0.0
  %960 = vmatpush1.msra.mxu0 %v848
  %961 = vmatprep.subr.mxu0 0.0
  %962 = vmatpush1.msra.mxu0 %v849
  %963 = vmatprep.subr.mxu0 0.0
  %964 = vmatpush1.msra.mxu0 %v850
  %965 = vmatprep.subr.mxu0 0.0
  %966 = vmatpush1.msra.mxu0 %v851
  %967 = vmatprep.subr.mxu0 0.0
  %968 = vmatpush1.msra.mxu0 %v852
  %969 = vmatprep.subr.mxu0 0.0
  %970 = vmatpush1.msra.mxu0 %v853
  %971 = vmatprep.subr.mxu0 0.0
  %972 = vmatpush1.msra.mxu0 %v854
  %973 = vmatprep.subr.mxu0 0.0
  %974 = vmatpush1.msra.mxu0 %v855
  %975 = vmatprep.subr.mxu0 0.0
  %976 = vmatpush1.msra.mxu0 %v856
  %977 = vmatprep.subr.mxu0 0.0
  %978 = vmatpush1.msra.mxu0 %v857
  %979 = vmatprep.subr.mxu0 0.0
  %980 = vmatpush1.msra.mxu0 %v858
  %981 = vmatprep.subr.mxu0 0.0
  %982 = vmatpush1.msra.mxu0 %v859
  %983 = vmatprep.subr.mxu0 0.0
  %984 = vmatpush1.msra.mxu0 %v860
  %985 = vmatprep.subr.mxu0 0.0
  %986 = vmatpush1.msra.mxu0 %v861
  %987 = vmatprep.subr.mxu0 0.0
  %988 = vmatpush1.msra.mxu0 %v862
  %989 = vmatprep.subr.mxu0 0.0
  %990 = vmatpush1.msra.mxu0 %v863
  %991 = vmatprep.subr.mxu0 0.0
  %992 = vmatpush1.msra.mxu0 0.0
  %993 = vmatprep.subr.mxu0 0.0
  %994 = vmatpush1.msra.mxu0 0.0
  %995 = vmatprep.subr.mxu0 0.0
  %996 = vmatpush1.msra.mxu0 0.0
  %997 = vmatprep.subr.mxu0 0.0
  %998 = vmatpush1.msra.mxu0 0.0
  %999 = vmatprep.subr.mxu0 0.0
  %1000 = vmatpush1.msra.mxu0 0.0
  %1001 = vmatprep.subr.mxu0 0.0
  %1002 = vmatpush1.msra.mxu0 0.0
  %1003 = vmatprep.subr.mxu0 0.0
  %1004 = vmatpush1.msra.mxu0 0.0
  %1005 = vmatprep.subr.mxu0 0.0
  %1006 = vmatpush1.msra.mxu0 0.0
  %1007 = vmatprep.subr.mxu0 0.0
  %1008 = vmatpush1.msra.mxu0 0.0
  %1009 = vmatprep.subr.mxu0 0.0
  %1010 = vmatpush1.msra.mxu0 0.0
  %1011 = vmatprep.subr.mxu0 0.0
  %1012 = vmatpush1.msra.mxu0 0.0
  %1013 = vmatprep.mubr.f32.mxu0 %v866
  %1014 = vmatmul.mubr.f32.gmra.mrb[0].mxu0 %v787
  %v1015 = vpop.f32.mrb[0].mxu0
  %v1016 = vadd.f32 0.0, %v1015
  %v1017 = vpop.f32.mrb[0].mxu0
  %1018 = vmatprep.mubr.f32.mxu0 %v869
  %1019 = vmatmul.mubr.f32.gmra.mrb[0].mxu0 %v789
  %v1020 = vpop.f32.mrb[0].mxu0
  %v1021 = vadd.f32 0.0, %v1020
  %v1022 = vpop.f32.mrb[0].mxu0
  %1023 = vmatprep.mubr.f32.mxu0 %v872
  %1024 = vmatmul.mubr.f32.gmra.mrb[0].mxu0 %v791
  %v1025 = vpop.f32.mrb[0].mxu0
  %v1026 = vadd.f32 0.0, %v1025
  %v1027 = vpop.f32.mrb[0].mxu0
  %1028 = vmatprep.mubr.f32.mxu0 %v875
  %1029 = vmatmul.mubr.f32.gmra.mrb[0].mxu0 %v793
  %v1030 = vpop.f32.mrb[0].mxu0
  %v1031 = vadd.f32 0.0, %v1030
  %v1032 = vpop.f32.mrb[0].mxu0
  %1033 = vmatprep.mubr.f32.mxu0 %v878
  %1034 = vmatmul.mubr.f32.gmra.mrb[0].mxu0 %v795
  %v1035 = vpop.f32.mrb[0].mxu0
  %v1036 = vadd.f32 0.0, %v1035
  %v1037 = vpop.f32.mrb[0].mxu0
  %1038 = vmatprep.mubr.f32.mxu0 %v881
  %1039 = vmatmul.mubr.f32.gmra.mrb[0].mxu0 %v797
  %v1040 = vpop.f32.mrb[0].mxu0
  %v1041 = vadd.f32 0.0, %v1040
  %v1042 = vpop.f32.mrb[0].mxu0
  %1043 = vmatprep.mubr.f32.mxu0 %v884
  %1044 = vmatmul.mubr.f32.gmra.mrb[0].mxu0 %v799
  %v1045 = vpop.f32.mrb[0].mxu0
  %v1046 = vadd.f32 0.0, %v1045
  %v1047 = vpop.f32.mrb[0].mxu0
  %1048 = vmatprep.mubr.f32.mxu0 %v887
  %1049 = vmatmul.mubr.f32.gmra.mrb[0].mxu0 %v801
  %v1050 = vpop.f32.mrb[0].mxu0
  %v1051 = vadd.f32 0.0, %v1050
  %v1052 = vpop.f32.mrb[0].mxu0
  %1053 = vmatprep.mubr.f32.mxu0 %v890
  %1054 = vmatmul.mubr.f32.gmra.mrb[0].mxu0 %v803
  %v1055 = vpop.f32.mrb[0].mxu0
  %v1056 = vadd.f32 0.0, %v1055
  %v1057 = vpop.f32.mrb[0].mxu0
  %1058 = vmatprep.mubr.f32.mxu0 %v893
  %1059 = vmatmul.mubr.f32.gmra.mrb[0].mxu0 %v805
  %v1060 = vpop.f32.mrb[0].mxu0
  %v1061 = vadd.f32 0.0, %v1060
  %v1062 = vpop.f32.mrb[0].mxu0
  %1063 = vmatprep.mubr.f32.mxu0 %v896
  %1064 = vmatmul.mubr.f32.gmra.mrb[0].mxu0 %v807
  %v1065 = vpop.f32.mrb[0].mxu0
  %v1066 = vadd.f32 0.0, %v1065
  %v1067 = vpop.f32.mrb[0].mxu0
  %1068 = vmatprep.mubr.f32.mxu0 %v899
  %1069 = vmatmul.mubr.f32.gmra.mrb[0].mxu0 %v809
  %v1070 = vpop.f32.mrb[0].mxu0
  %v1071 = vadd.f32 0.0, %v1070
  %v1072 = vpop.f32.mrb[0].mxu0
  %1073 = vmatprep.mubr.f32.mxu0 %v902
  %1074 = vmatmul.mubr.f32.gmra.mrb[0].mxu0 %v811
  %v1075 = vpop.f32.mrb[0].mxu0
  %v1076 = vadd.f32 0.0, %v1075
  %v1077 = vpop.f32.mrb[0].mxu0
  %1078 = vmatprep.mubr.f32.mxu0 %v905
  %1079 = vmatmul.mubr.f32.gmra.mrb[0].mxu0 %v813
  %v1080 = vpop.f32.mrb[0].mxu0
  %v1081 = vadd.f32 0.0, %v1080
  %v1082 = vpop.f32.mrb[0].mxu0
  %1083 = vmatprep.mubr.f32.mxu0 %v908
  %1084 = vmatmul.mubr.f32.gmra.mrb[0].mxu0 %v815
  %v1085 = vpop.f32.mrb[0].mxu0
  %v1086 = vadd.f32 0.0, %v1085
  %v1087 = vpop.f32.mrb[0].mxu0
  %1088 = vmatprep.mubr.f32.mxu0 %v911
  %1089 = vmatmul.mubr.f32.gmra.mrb[0].mxu0 %v817
  %v1090 = vpop.f32.mrb[0].mxu0
  %v1091 = vadd.f32 0.0, %v1090
  %v1092 = vpop.f32.mrb[0].mxu0
  %1093 = vmatprep.mubr.f32.mxu0 %v914
  %1094 = vmatmul.mubr.f32.gmra.mrb[0].mxu0 %v819
  %v1095 = vpop.f32.mrb[0].mxu0
  %v1096 = vadd.f32 0.0, %v1095
  %v1097 = vpop.f32.mrb[0].mxu0
  %1098 = vmatprep.mubr.f32.mxu0 %v917
  %1099 = vmatmul.mubr.f32.gmra.mrb[0].mxu0 %v821
  %v1100 = vpop.f32.mrb[0].mxu0
  %v1101 = vadd.f32 0.0, %v1100
  %v1102 = vpop.f32.mrb[0].mxu0
  %1103 = vmatprep.mubr.f32.mxu0 %v920
  %1104 = vmatmul.mubr.f32.gmra.mrb[0].mxu0 %v823
  %v1105 = vpop.f32.mrb[0].mxu0
  %v1106 = vadd.f32 0.0, %v1105
  %v1107 = vpop.f32.mrb[0].mxu0
  %1108 = vmatprep.mubr.f32.mxu0 %v923
  %1109 = vmatmul.mubr.f32.gmra.mrb[0].mxu0 %v825
  %v1110 = vpop.f32.mrb[0].mxu0
  %v1111 = vadd.f32 0.0, %v1110
  %v1112 = vpop.f32.mrb[0].mxu0
  %1113 = vmatprep.mubr.f32.mxu0 %v926
  %1114 = vmatmul.mubr.f32.gmra.mrb[0].mxu0 %v827
  %v1115 = vpop.f32.mrb[0].mxu0
  %v1116 = vadd.f32 0.0, %v1115
  %v1117 = vpop.f32.mrb[0].mxu0
  %1118 = vmatprep.mubr.f32.mxu0 %v929
  %1119 = vmatmul.mubr.f32.gmra.mrb[0].mxu0 %v829
  %v1120 = vpop.f32.mrb[0].mxu0
  %v1121 = vadd.f32 0.0, %v1120
  %v1122 = vpop.f32.mrb[0].mxu0
  %1123 = vmatprep.mubr.f32.mxu0 %v932
  %1124 = vmatmul.mubr.f32.gmra.mrb[0].mxu0 %v831
  %v1125 = vpop.f32.mrb[0].mxu0
  %v1126 = vadd.f32 0.0, %v1125
  %v1127 = vpop.f32.mrb[0].mxu0
  %1128 = vmatprep.mubr.f32.mxu0 %v935
  %1129 = vmatmul.mubr.f32.gmra.mrb[0].mxu0 %v833
  %v1130 = vpop.f32.mrb[0].mxu0
  %v1131 = vadd.f32 0.0, %v1130
  %v1132 = vpop.f32.mrb[0].mxu0
  %1133 = vmatprep.mubr.f32.mxu0 %v938
  %1134 = vmatmul.mubr.f32.gmra.mrb[0].mxu0 %v835
  %v1135 = vpop.f32.mrb[0].mxu0
  %v1136 = vadd.f32 0.0, %v1135
  %v1137 = vpop.f32.mrb[0].mxu0
  %1138 = vmatprep.mubr.f32.mxu0 %v941
  %1139 = vmatmul.mubr.f32.gmra.mrb[0].mxu0 %v837
  %v1140 = vpop.f32.mrb[0].mxu0
  %v1141 = vadd.f32 0.0, %v1140
  %v1142 = vpop.f32.mrb[0].mxu0
  %1143 = vmatprep.mubr.f32.mxu0 %v944
  %1144 = vmatmul.mubr.f32.gmra.mrb[0].mxu0 %v839
  %v1145 = vpop.f32.mrb[0].mxu0
  %v1146 = vadd.f32 0.0, %v1145
  %v1147 = vpop.f32.mrb[0].mxu0
  %1148 = vmatprep.mubr.f32.mxu0 %v947
  %1149 = vmatmul.mubr.f32.gmra.mrb[0].mxu0 %v841
  %v1150 = vpop.f32.mrb[0].mxu0
  %v1151 = vadd.f32 0.0, %v1150
  %v1152 = vpop.f32.mrb[0].mxu0
  %1153 = vdwg.mxu0
  %v1154 = vadd.f32 %v1016, %v1021
  %v1155 = vadd.f32 %v1021, %v1026
  %v1156 = vadd.f32 %v1026, %v1031
  %v1157 = vadd.f32 %v1031, %v1036
  %v1158 = vadd.f32 %v1036, %v1041
  %v1159 = vadd.f32 %v1041, %v1046
  %v1160 = vadd.f32 %v1046, %v1051
  %v1161 = vadd.f32 %v1051, %v1056
  %v1162 = vadd.f32 %v1056, %v1061
  %v1163 = vadd.f32 %v1061, %v1066
  %v1164 = vadd.f32 %v1066, %v1071
  %v1165 = vadd.f32 %v1071, %v1076
  %v1166 = vadd.f32 %v1076, %v1081
  %v1167 = vadd.f32 %v1081, %v1086
  %v1168 = vadd.f32 %v1086, %v1091
  %v1169 = vadd.f32 %v1091, %v1096
  %v1170 = vadd.f32 %v1096, %v1101
  %v1171 = vadd.f32 %v1101, %v1106
  %v1172 = vadd.f32 %v1106, %v1111
  %v1173 = vadd.f32 %v1111, %v1116
  %v1174 = vadd.f32 %v1116, %v1121
  %v1175 = vadd.f32 %v1121, %v1126
  %v1176 = vadd.f32 %v1126, %v1131
  %v1177 = vadd.f32 %v1131, %v1136
  %v1178 = vadd.f32 %v1136, %v1141
  %v1179 = vadd.f32 %v1141, %v1146
  %v1180 = vadd.f32 %v1146, %v1151
  %v1181 = vmul.f32 %v1154, 0.5
  %v1182 = vmul.f32 %v1155, 0.5
  %v1183 = vmul.f32 %v1156, 0.5
  %v1184 = vmul.f32 %v1157, 0.5
  %v1185 = vmul.f32 %v1158, 0.5
  %v1186 = vmul.f32 %v1159, 0.5
  %v1187 = vmul.f32 %v1160, 0.5
  %v1188 = vmul.f32 %v1161, 0.5
  %v1189 = vmul.f32 %v1162, 0.5
  %v1190 = vmul.f32 %v1163, 0.5
  %v1191 = vmul.f32 %v1164, 0.5
  %v1192 = vmul.f32 %v1165, 0.5
  %v1193 = vmul.f32 %v1166, 0.5
  %v1194 = vmul.f32 %v1167, 0.5
  %v1195 = vmul.f32 %v1168, 0.5
  %v1196 = vmul.f32 %v1169, 0.5
  %v1197 = vmul.f32 %v1170, 0.5
  %v1198 = vmul.f32 %v1171, 0.5
  %v1199 = vmul.f32 %v1172, 0.5
  %v1200 = vmul.f32 %v1173, 0.5
  %v1201 = vmul.f32 %v1174, 0.5
  %v1202 = vmul.f32 %v1175, 0.5
  %v1203 = vmul.f32 %v1176, 0.5
  %v1204 = vmul.f32 %v1177, 0.5
  %v1205 = vmul.f32 %v1178, 0.5
  %v1206 = vmul.f32 %v1179, 0.5
  %v1207 = vmul.f32 %v1180, 0.5
  %1227 = vrot.lane.b32.xlu0 %v1183, 84
  %v1228 = vpop.permute.xlu0 %1227
  %1229 = vrot.lane.b32.xlu0 %v1184, 84
  %v1230 = vpop.permute.xlu0 %1229
  %1231 = vrot.lane.b32.xlu0 %v1185, 84
  %v1232 = vpop.permute.xlu0 %1231
  %1233 = vrot.lane.b32.xlu0 %v1186, 84
  %v1234 = vpop.permute.xlu0 %1233
  %1235 = vrot.lane.b32.xlu0 %v1187, 84
  %v1236 = vpop.permute.xlu0 %1235
  %1237 = vrot.lane.b32.xlu0 %v1188, 84
  %v1238 = vpop.permute.xlu0 %1237
  %1239 = vrot.lane.b32.xlu0 %v1189, 84
  %v1240 = vpop.permute.xlu0 %1239
  %1241 = vrot.lane.b32.xlu0 %v1190, 84
  %v1242 = vpop.permute.xlu0 %1241
  %1243 = vrot.lane.b32.xlu0 %v1191, 84
  %v1244 = vpop.permute.xlu0 %1243
  %1245 = vrot.lane.b32.xlu0 %v1192, 84
  %v1246 = vpop.permute.xlu0 %1245
  %1247 = vrot.lane.b32.xlu0 %v1193, 84
  %v1248 = vpop.permute.xlu0 %1247
  %1249 = vrot.lane.b32.xlu0 %v1194, 84
  %v1250 = vpop.permute.xlu0 %1249
  %1251 = vrot.lane.b32.xlu0 %v1195, 84
  %v1252 = vpop.permute.xlu0 %1251
  %1253 = vrot.lane.b32.xlu0 %v1196, 84
  %v1254 = vpop.permute.xlu0 %1253
  %1255 = vrot.lane.b32.xlu0 %v1197, 84
  %v1256 = vpop.permute.xlu0 %1255
  %1257 = vrot.lane.b32.xlu0 %v1198, 84
  %v1258 = vpop.permute.xlu0 %1257
  %1259 = vrot.lane.b32.xlu0 %v1199, 84
  %v1260 = vpop.permute.xlu0 %1259
  %1261 = vrot.lane.b32.xlu0 %v1200, 84
  %v1262 = vpop.permute.xlu0 %1261
  %1263 = vrot.lane.b32.xlu0 %v1201, 84
  %v1264 = vpop.permute.xlu0 %1263
  %1286 = vrot.lane.b32.xlu0 %v1185, 40
  %v1287 = vpop.permute.xlu0 %1286
  %1288 = vrot.lane.b32.xlu0 %v1186, 40
  %v1289 = vpop.permute.xlu0 %1288
  %1290 = vrot.lane.b32.xlu0 %v1187, 40
  %v1291 = vpop.permute.xlu0 %1290
  %1292 = vrot.lane.b32.xlu0 %v1188, 40
  %v1293 = vpop.permute.xlu0 %1292
  %1294 = vrot.lane.b32.xlu0 %v1189, 40
  %v1295 = vpop.permute.xlu0 %1294
  %1296 = vrot.lane.b32.xlu0 %v1190, 40
  %v1297 = vpop.permute.xlu0 %1296
  %1298 = vrot.lane.b32.xlu0 %v1191, 40
  %v1299 = vpop.permute.xlu0 %1298
  %1300 = vrot.lane.b32.xlu0 %v1192, 40
  %v1301 = vpop.permute.xlu0 %1300
  %1302 = vrot.lane.b32.xlu0 %v1193, 40
  %v1303 = vpop.permute.xlu0 %1302
  %1304 = vrot.lane.b32.xlu0 %v1194, 40
  %v1305 = vpop.permute.xlu0 %1304
  %1306 = vrot.lane.b32.xlu0 %v1195, 40
  %v1307 = vpop.permute.xlu0 %1306
  %1308 = vrot.lane.b32.xlu0 %v1196, 40
  %v1309 = vpop.permute.xlu0 %1308
  %1310 = vrot.lane.b32.xlu0 %v1197, 40
  %v1311 = vpop.permute.xlu0 %1310
  %1312 = vrot.lane.b32.xlu0 %v1198, 40
  %v1313 = vpop.permute.xlu0 %1312
  %1314 = vrot.lane.b32.xlu0 %v1199, 40
  %v1315 = vpop.permute.xlu0 %1314
  %1316 = vrot.lane.b32.xlu0 %v1200, 40
  %v1317 = vpop.permute.xlu0 %1316
  %1318 = vrot.lane.b32.xlu0 %v1201, 40
  %v1319 = vpop.permute.xlu0 %1318
  %1320 = vrot.lane.b32.xlu0 %v1202, 40
  %v1321 = vpop.permute.xlu0 %1320
  %1322 = vrot.lane.b32.xlu0 %v1203, 40
  %v1323 = vpop.permute.xlu0 %1322
  %1345 = vrot.lane.b32.xlu0 %v1187, 124
  %v1346 = vpop.permute.xlu0 %1345
  %1347 = vrot.lane.b32.xlu0 %v1188, 124
  %v1348 = vpop.permute.xlu0 %1347
  %1349 = vrot.lane.b32.xlu0 %v1189, 124
  %v1350 = vpop.permute.xlu0 %1349
  %1351 = vrot.lane.b32.xlu0 %v1190, 124
  %v1352 = vpop.permute.xlu0 %1351
  %1353 = vrot.lane.b32.xlu0 %v1191, 124
  %v1354 = vpop.permute.xlu0 %1353
  %1355 = vrot.lane.b32.xlu0 %v1192, 124
  %v1356 = vpop.permute.xlu0 %1355
  %1357 = vrot.lane.b32.xlu0 %v1193, 124
  %v1358 = vpop.permute.xlu0 %1357
  %1359 = vrot.lane.b32.xlu0 %v1194, 124
  %v1360 = vpop.permute.xlu0 %1359
  %1361 = vrot.lane.b32.xlu0 %v1195, 124
  %v1362 = vpop.permute.xlu0 %1361
  %1363 = vrot.lane.b32.xlu0 %v1196, 124
  %v1364 = vpop.permute.xlu0 %1363
  %1365 = vrot.lane.b32.xlu0 %v1197, 124
  %v1366 = vpop.permute.xlu0 %1365
  %1367 = vrot.lane.b32.xlu0 %v1198, 124
  %v1368 = vpop.permute.xlu0 %1367
  %1369 = vrot.lane.b32.xlu0 %v1199, 124
  %v1370 = vpop.permute.xlu0 %1369
  %1371 = vrot.lane.b32.xlu0 %v1200, 124
  %v1372 = vpop.permute.xlu0 %1371
  %1373 = vrot.lane.b32.xlu0 %v1201, 124
  %v1374 = vpop.permute.xlu0 %1373
  %1375 = vrot.lane.b32.xlu0 %v1202, 124
  %v1376 = vpop.permute.xlu0 %1375
  %1377 = vrot.lane.b32.xlu0 %v1203, 124
  %v1378 = vpop.permute.xlu0 %1377
  %1379 = vrot.lane.b32.xlu0 %v1204, 124
  %v1380 = vpop.permute.xlu0 %1379
  %1381 = vrot.lane.b32.xlu0 %v1205, 124
  %v1382 = vpop.permute.xlu0 %1381
  %1404 = vrot.lane.b32.xlu0 %v1189, 80
  %v1405 = vpop.permute.xlu0 %1404
  %1406 = vrot.lane.b32.xlu0 %v1190, 80
  %v1407 = vpop.permute.xlu0 %1406
  %1408 = vrot.lane.b32.xlu0 %v1191, 80
  %v1409 = vpop.permute.xlu0 %1408
  %1410 = vrot.lane.b32.xlu0 %v1192, 80
  %v1411 = vpop.permute.xlu0 %1410
  %1412 = vrot.lane.b32.xlu0 %v1193, 80
  %v1413 = vpop.permute.xlu0 %1412
  %1414 = vrot.lane.b32.xlu0 %v1194, 80
  %v1415 = vpop.permute.xlu0 %1414
  %1416 = vrot.lane.b32.xlu0 %v1195, 80
  %v1417 = vpop.permute.xlu0 %1416
  %1418 = vrot.lane.b32.xlu0 %v1196, 80
  %v1419 = vpop.permute.xlu0 %1418
  %1420 = vrot.lane.b32.xlu0 %v1197, 80
  %v1421 = vpop.permute.xlu0 %1420
  %1422 = vrot.lane.b32.xlu0 %v1198, 80
  %v1423 = vpop.permute.xlu0 %1422
  %1424 = vrot.lane.b32.xlu0 %v1199, 80
  %v1425 = vpop.permute.xlu0 %1424
  %1426 = vrot.lane.b32.xlu0 %v1200, 80
  %v1427 = vpop.permute.xlu0 %1426
  %1428 = vrot.lane.b32.xlu0 %v1201, 80
  %v1429 = vpop.permute.xlu0 %1428
  %1430 = vrot.lane.b32.xlu0 %v1202, 80
  %v1431 = vpop.permute.xlu0 %1430
  %1432 = vrot.lane.b32.xlu0 %v1203, 80
  %v1433 = vpop.permute.xlu0 %1432
  %1434 = vrot.lane.b32.xlu0 %v1204, 80
  %v1435 = vpop.permute.xlu0 %1434
  %1436 = vrot.lane.b32.xlu0 %v1205, 80
  %v1437 = vpop.permute.xlu0 %1436
  %1438 = vrot.lane.b32.xlu0 %v1206, 80
  %v1439 = vpop.permute.xlu0 %1438
  %1440 = vrot.lane.b32.xlu0 %v1207, 80
  %v1441 = vpop.permute.xlu0 %1440
  %vm1461 = vcmask 687104
  %v1462 = vsel %vm1461, %v1181, %v1228
  %v1463 = vsel %vm1461, %v1182, %v1230
  %v1464 = vsel %vm1461, %v1183, %v1232
  %v1465 = vsel %vm1461, %v1184, %v1234
  %v1466 = vsel %vm1461, %v1185, %v1236
  %v1467 = vsel %vm1461, %v1186, %v1238
  %v1468 = vsel %vm1461, %v1187, %v1240
  %v1469 = vsel %vm1461, %v1188, %v1242
  %v1470 = vsel %vm1461, %v1189, %v1244
  %v1471 = vsel %vm1461, %v1190, %v1246
  %v1472 = vsel %vm1461, %v1191, %v1248
  %v1473 = vsel %vm1461, %v1192, %v1250
  %v1474 = vsel %vm1461, %v1193, %v1252
  %v1475 = vsel %vm1461, %v1194, %v1254
  %v1476 = vsel %vm1461, %v1195, %v1256
  %v1477 = vsel %vm1461, %v1196, %v1258
  %v1478 = vsel %vm1461, %v1197, %v1260
  %v1479 = vsel %vm1461, %v1198, %v1262
  %v1480 = vsel %vm1461, %v1199, %v1264
  %v1481 = vsel %vm864, %v1228, %v1287
  %v1482 = vsel %vm864, %v1230, %v1289
  %v1483 = vsel %vm864, %v1232, %v1291
  %v1484 = vsel %vm864, %v1234, %v1293
  %v1485 = vsel %vm864, %v1236, %v1295
  %v1486 = vsel %vm864, %v1238, %v1297
  %v1487 = vsel %vm864, %v1240, %v1299
  %v1488 = vsel %vm864, %v1242, %v1301
  %v1489 = vsel %vm864, %v1244, %v1303
  %v1490 = vsel %vm864, %v1246, %v1305
  %v1491 = vsel %vm864, %v1248, %v1307
  %v1492 = vsel %vm864, %v1250, %v1309
  %v1493 = vsel %vm864, %v1252, %v1311
  %v1494 = vsel %vm864, %v1254, %v1313
  %v1495 = vsel %vm864, %v1256, %v1315
  %v1496 = vsel %vm864, %v1258, %v1317
  %v1497 = vsel %vm864, %v1260, %v1319
  %v1498 = vsel %vm864, %v1262, %v1321
  %v1499 = vsel %vm864, %v1264, %v1323
  %vm1500 = vcmask 1014784
  %v1501 = vsel %vm1500, %v1481, %v1346
  %v1502 = vsel %vm1500, %v1482, %v1348
  %v1503 = vsel %vm1500, %v1483, %v1350
  %v1504 = vsel %vm1500, %v1484, %v1352
  %v1505 = vsel %vm1500, %v1485, %v1354
  %v1506 = vsel %vm1500, %v1486, %v1356
  %v1507 = vsel %vm1500, %v1487, %v1358
  %v1508 = vsel %vm1500, %v1488, %v1360
  %v1509 = vsel %vm1500, %v1489, %v1362
  %v1510 = vsel %vm1500, %v1490, %v1364
  %v1511 = vsel %vm1500, %v1491, %v1366
  %v1512 = vsel %vm1500, %v1492, %v1368
  %v1513 = vsel %vm1500, %v1493, %v1370
  %v1514 = vsel %vm1500, %v1494, %v1372
  %v1515 = vsel %vm1500, %v1495, %v1374
  %v1516 = vsel %vm1500, %v1496, %v1376
  %v1517 = vsel %vm1500, %v1497, %v1378
  %v1518 = vsel %vm1500, %v1498, %v1380
  %v1519 = vsel %vm1500, %v1499, %v1382
  %vm1520 = vcmask 654336
  %v1521 = vsel %vm1520, %v1346, %v1405
  %v1522 = vsel %vm1520, %v1348, %v1407
  %v1523 = vsel %vm1520, %v1350, %v1409
  %v1524 = vsel %vm1520, %v1352, %v1411
  %v1525 = vsel %vm1520, %v1354, %v1413
  %v1526 = vsel %vm1520, %v1356, %v1415
  %v1527 = vsel %vm1520, %v1358, %v1417
  %v1528 = vsel %vm1520, %v1360, %v1419
  %v1529 = vsel %vm1520, %v1362, %v1421
  %v1530 = vsel %vm1520, %v1364, %v1423
  %v1531 = vsel %vm1520, %v1366, %v1425
  %v1532 = vsel %vm1520, %v1368, %v1427
  %v1533 = vsel %vm1520, %v1370, %v1429
  %v1534 = vsel %vm1520, %v1372, %v1431
  %v1535 = vsel %vm1520, %v1374, %v1433
  %v1536 = vsel %vm1520, %v1376, %v1435
  %v1537 = vsel %vm1520, %v1378, %v1437
  %v1538 = vsel %vm1520, %v1380, %v1439
  %v1539 = vsel %vm1520, %v1382, %v1441
  %v1540 = vld [vmem:[%s4] sm:$0xff]
  %v1541 = vld [vmem:[%s4 + $0x8] sm:$0xff]
  %v1542 = vld [vmem:[%s4 + $0x10] sm:$0xff]
  %v1543 = vld [vmem:[%s4 + $0x18] sm:$0xff]
  %v1544 = vld [vmem:[%s4 + $0x20] sm:$0xff]
  %v1545 = vld [vmem:[%s4 + $0x28] sm:$0xff]
  %v1546 = vld [vmem:[%s4 + $0x30] sm:$0xff]
  %v1547 = vld [vmem:[%s4 + $0x38] sm:$0xff]
  %v1548 = vld [vmem:[%s4 + $0x40] sm:$0xff]
  %v1549 = vld [vmem:[%s4 + $0x48] sm:$0xff]
  %v1550 = vld [vmem:[%s4 + $0x50] sm:$0xff]
  %v1551 = vld [vmem:[%s4 + $0x58] sm:$0xff]
  %v1552 = vld [vmem:[%s4 + $0x60] sm:$0xff]
  %v1553 = vld [vmem:[%s4 + $0x68] sm:$0xff]
  %v1554 = vld [vmem:[%s4 + $0x70] sm:$0xff]
  %v1555 = vld [vmem:[%s4 + $0x78] sm:$0xff]
  %v1556 = vld [vmem:[%s4 + $0x80] sm:$0xff]
  %v1557 = vld [vmem:[%s4 + $0x88] sm:$0xff]
  %v1558 = vld [vmem:[%s4 + $0x90] sm:$0xff]
  %v1559 = vld [vmem:[%s4 + $0x98] sm:$0xff]
  %v1560 = vld [vmem:[%s4 + $0xa0] sm:$0xff]
  %v1561 = vld [vmem:[%s4 + $0xa8] sm:$0xff]
  %v1562 = vld [vmem:[%s4 + $0xb0] sm:$0xff]
  %v1563 = vld [vmem:[%s4 + $0xb8] sm:$0xff]
  %v1564 = vld [vmem:[%s4 + $0xc0] sm:$0xff]
  %v1565 = vld [vmem:[%s4 + $0xc8] sm:$0xff]
  %v1566 = vld [vmem:[%s4 + $0xd0] sm:$0xff]
  %v1567 = vld [vmem:[%s4 + $0xd8] sm:$0xff]
  %v1568 = vld [vmem:[%s4 + $0xe0] sm:$0xff]
  %v1569 = vld [vmem:[%s4 + $0xe8] sm:$0xff]
  %v1570 = vld [vmem:[%s4 + $0xf0] sm:$0xff]
  %v1571 = vld [vmem:[%s4 + $0xf8] sm:$0xff]
  %v1572 = vld [vmem:[%s4 + $0x100] sm:$0xff]
  %v1573 = vld [vmem:[%s4 + $0x108] sm:$0xff]
  %v1574 = vld [vmem:[%s4 + $0x110] sm:$0xff]
  %v1575 = vld [vmem:[%s4 + $0x118] sm:$0xff]
  %v1576 = vld [vmem:[%s4 + $0x120] sm:$0xff]
  %v1577 = vld [vmem:[%s4 + $0x128] sm:$0xff]
  %v1578 = vld [vmem:[%s4 + $0x130] sm:$0xff]
  %v1579 = vld [vmem:[%s4 + $0x138] sm:$0xff]
  %v1580 = vld [vmem:[%s4 + $0x140] sm:$0xff]
  %v1581 = vld [vmem:[%s4 + $0x148] sm:$0xff]
  %v1582 = vld [vmem:[%s4 + $0x150] sm:$0xff]
  %v1583 = vld [vmem:[%s4 + $0x158] sm:$0xff]
  %v1584 = vld [vmem:[%s4 + $0x160] sm:$0xff]
  %v1585 = vld [vmem:[%s4 + $0x168] sm:$0xff]
  %v1586 = vld [vmem:[%s4 + $0x170] sm:$0xff]
  %v1587 = vld [vmem:[%s4 + $0x178] sm:$0xff]
  %v1588 = vld [vmem:[%s4 + $0x180] sm:$0xff]
  %v1589 = vld [vmem:[%s4 + $0x188] sm:$0xff]
  %v1590 = vld [vmem:[%s4 + $0x190] sm:$0xff]
  %v1591 = vld [vmem:[%s4 + $0x198] sm:$0xff]
  %v1592 = vld [vmem:[%s4 + $0x1a0] sm:$0xff]
  %v1593 = vld [vmem:[%s4 + $0x1a8] sm:$0xff]
  %v1594 = vld [vmem:[%s4 + $0x1b0] sm:$0xff]
  %v1595 = vld [vmem:[%s4 + $0x1b8] sm:$0xff]
  %v1596 = vld [vmem:[%s4 + $0x1c0] sm:$0xff]
  %v1597 = vld [vmem:[%s4 + $0x1c8] sm:$0xff]
  %v1598 = vld [vmem:[%s4 + $0x1d0] sm:$0xff]
  %v1599 = vld [vmem:[%s4 + $0x1d8] sm:$0xff]
  %v1600 = vld [vmem:[%s4 + $0x1e0] sm:$0xff]
  %v1601 = vld [vmem:[%s4 + $0x1e8] sm:$0xff]
  %v1602 = vld [vmem:[%s4 + $0x1f0] sm:$0xff]
  %v1603 = vld [vmem:[%s4 + $0x1f8] sm:$0xff]
  %v1604 = vld [vmem:[%s4 + $0x200] sm:$0xff]
  %v1605 = vld [vmem:[%s4 + $0x208] sm:$0xff]
  %v1606 = vld [vmem:[%s4 + $0x210] sm:$0xff]
  %v1607 = vld [vmem:[%s4 + $0x218] sm:$0xff]
  %v1608 = vld [vmem:[%s4 + $0x220] sm:$0xff]
  %v1609 = vld [vmem:[%s4 + $0x228] sm:$0xff]
  %v1610 = vld [vmem:[%s4 + $0x230] sm:$0xff]
  %v1611 = vld [vmem:[%s4 + $0x238] sm:$0xff]
  %v1612 = vld [vmem:[%s4 + $0x240] sm:$0xff]
  %v1613 = vld [vmem:[%s4 + $0x248] sm:$0xff]
  %v1614 = vld [vmem:[%s4 + $0x250] sm:$0xff]
  %v1615 = vld [vmem:[%s4 + $0x258] sm:$0xff]
  %v1616 = vld [vmem:[%s4 + $0x260] sm:$0xff]
  %v1617 = vld [vmem:[%s4 + $0x268] sm:$0xff]
  %v1618 = vld [vmem:[%s4 + $0x270] sm:$0xff]
  %v1619 = vld [vmem:[%s4 + $0x278] sm:$0xff]
  %v1620 = vld [vmem:[%s4 + $0x280] sm:$0xff]
  %v1621 = vld [vmem:[%s4 + $0x288] sm:$0xff]
  %v1622 = vld [vmem:[%s4 + $0x290] sm:$0xff]
  %v1623 = vld [vmem:[%s4 + $0x298] sm:$0xff]
  %v1624 = vld [vmem:[%s4 + $0x2a0] sm:$0xff]
  %v1625 = vld [vmem:[%s4 + $0x2a8] sm:$0xff]
  %v1626 = vld [vmem:[%s4 + $0x2b0] sm:$0xff]
  %v1627 = vld [vmem:[%s4 + $0x2b8] sm:$0xff]
  %v1628 = vld [vmem:[%s4 + $0x2c0] sm:$0xff]
  %v1629 = vld [vmem:[%s4 + $0x2c8] sm:$0xff]
  %v1630 = vld [vmem:[%s4 + $0x2d0] sm:$0xff]
  %v1631 = vld [vmem:[%s4 + $0x2d8] sm:$0xff]
  %v1632 = vld [vmem:[%s4 + $0x2e0] sm:$0xff]
  %v1633 = vld [vmem:[%s4 + $0x2e8] sm:$0xff]
  %v1634 = vld [vmem:[%s4 + $0x2f0] sm:$0xff]
  %v1635 = vld [vmem:[%s4 + $0x2f8] sm:$0xff]
  %v1636 = vld [vmem:[%s4 + $0x300] sm:$0xff]
  %v1637 = vld [vmem:[%s4 + $0x308] sm:$0xff]
  %v1638 = vld [vmem:[%s4 + $0x310] sm:$0xff]
  %v1639 = vld [vmem:[%s4 + $0x318] sm:$0xff]
  %v1640 = vld [vmem:[%s4 + $0x320] sm:$0xff]
  %v1641 = vld [vmem:[%s4 + $0x328] sm:$0xff]
  %v1642 = vld [vmem:[%s4 + $0x330] sm:$0xff]
  %v1643 = vld [vmem:[%s4 + $0x338] sm:$0xff]
  %v1644 = vld [vmem:[%s4 + $0x340] sm:$0xf]
  %v1645 = vld [vmem:[%s4 + $0x348] sm:$0xf]
  %v1646 = vld [vmem:[%s5] sm:$0x3]
  %v1648 = vlaneseq
  %v1649 = vshrl.u32 %v1648, 7
  %v1650 = vsub.s32 0, %v1649
  %v1651 = vrot.slane %v1646, %v1650
  %v1652 = vlaneseq
  %v1653 = vshrl.u32 %v1652, 7
  %v1654 = vsub.s32 1, %v1653
  %v1655 = vrot.slane %v1646, %v1654
  %vm1658 = vcmask 293888
  %v1659 = vsel %vm1658, %v1405, 0
  %v1661 = vsel %vm1658, %v1407, 0
  %v1663 = vsel %vm1658, %v1409, 0
  %v1665 = vsel %vm1658, %v1411, 0
  %v1667 = vsel %vm1658, %v1413, 0
  %v1669 = vsel %vm1658, %v1415, 0
  %v1671 = vsel %vm1658, %v1417, 0
  %v1673 = vsel %vm1658, %v1419, 0
  %v1675 = vsel %vm1658, %v1421, 0
  %v1677 = vsel %vm1658, %v1423, 0
  %v1679 = vsel %vm1658, %v1425, 0
  %v1681 = vsel %vm1658, %v1427, 0
  %v1683 = vsel %vm1658, %v1429, 0
  %v1685 = vsel %vm1658, %v1431, 0
  %v1687 = vsel %vm1658, %v1433, 0
  %v1689 = vsel %vm1658, %v1435, 0
  %v1691 = vsel %vm1658, %v1437, 0
  %v1693 = vsel %vm1658, %v1439, 0
  %v1695 = vsel %vm1658, %v1441, 0
  %vm1697 = vcmask 1043456
  %v1699 = vsel %vm1697, %v1644, 0
  %v1702 = vsel %vm1697, %v1645, 0
  %1704 = vmatprep.subr.mxu0 %v1541
  %1705 = vmatpush1.msra.mxu0 %v1540
  %1706 = vmatprep.subr.mxu0 %v1543
  %1707 = vmatpush1.msra.mxu0 %v1542
  %1708 = vmatprep.subr.mxu0 %v1545
  %1709 = vmatpush1.msra.mxu0 %v1544
  %1710 = vmatprep.subr.mxu0 %v1547
  %1711 = vmatpush1.msra.mxu0 %v1546
  %1712 = vmatprep.subr.mxu0 %v1549
  %1713 = vmatpush1.msra.mxu0 %v1548
  %1714 = vmatprep.subr.mxu0 %v1551
  %1715 = vmatpush1.msra.mxu0 %v1550
  %1716 = vmatprep.subr.mxu0 %v1553
  %1717 = vmatpush1.msra.mxu0 %v1552
  %1718 = vmatprep.subr.mxu0 %v1555
  %1719 = vmatpush1.msra.mxu0 %v1554
  %1720 = vmatprep.subr.mxu0 %v1557
  %1721 = vmatpush1.msra.mxu0 %v1556
  %1722 = vmatprep.subr.mxu0 %v1559
  %1723 = vmatpush1.msra.mxu0 %v1558
  %1724 = vmatprep.subr.mxu0 %v1561
  %1725 = vmatpush1.msra.mxu0 %v1560
  %1726 = vmatprep.subr.mxu0 %v1563
  %1727 = vmatpush1.msra.mxu0 %v1562
  %1728 = vmatprep.subr.mxu0 %v1565
  %1729 = vmatpush1.msra.mxu0 %v1564
  %1730 = vmatprep.subr.mxu0 %v1567
  %1731 = vmatpush1.msra.mxu0 %v1566
  %1732 = vmatprep.subr.mxu0 %v1569
  %1733 = vmatpush1.msra.mxu0 %v1568
  %1734 = vmatprep.subr.mxu0 %v1571
  %1735 = vmatpush1.msra.mxu0 %v1570
  %1736 = vmatprep.subr.mxu0 %v1573
  %1737 = vmatpush1.msra.mxu0 %v1572
  %1738 = vmatprep.subr.mxu0 %v1575
  %1739 = vmatpush1.msra.mxu0 %v1574
  %1740 = vmatprep.subr.mxu0 %v1577
  %1741 = vmatpush1.msra.mxu0 %v1576
  %1742 = vmatprep.subr.mxu0 %v1579
  %1743 = vmatpush1.msra.mxu0 %v1578
  %1744 = vmatprep.subr.mxu0 %v1581
  %1745 = vmatpush1.msra.mxu0 %v1580
  %1746 = vmatprep.subr.mxu0 %v1583
  %1747 = vmatpush1.msra.mxu0 %v1582
  %1748 = vmatprep.subr.mxu0 %v1585
  %1749 = vmatpush1.msra.mxu0 %v1584
  %1750 = vmatprep.subr.mxu0 %v1587
  %1751 = vmatpush1.msra.mxu0 %v1586
  %1752 = vmatprep.subr.mxu0 %v1589
  %1753 = vmatpush1.msra.mxu0 %v1588
  %1754 = vmatprep.subr.mxu0 %v1591
  %1755 = vmatpush1.msra.mxu0 %v1590
  %1756 = vmatprep.subr.mxu0 %v1593
  %1757 = vmatpush1.msra.mxu0 %v1592
  %1758 = vmatprep.subr.mxu0 %v1595
  %1759 = vmatpush1.msra.mxu0 %v1594
  %1760 = vmatprep.subr.mxu0 %v1597
  %1761 = vmatpush1.msra.mxu0 %v1596
  %1762 = vmatprep.subr.mxu0 %v1599
  %1763 = vmatpush1.msra.mxu0 %v1598
  %1764 = vmatprep.subr.mxu0 %v1601
  %1765 = vmatpush1.msra.mxu0 %v1600
  %1766 = vmatprep.subr.mxu0 %v1603
  %1767 = vmatpush1.msra.mxu0 %v1602
  %1768 = vmatprep.mubr.f32.mxu0 %v1501
  %1769 = vmatmul.mubr.f32.gmra.mrb[0].mxu0 %v1462
  %v1770 = vpop.f32.mrb[0].mxu0
  %v1771 = vadd.f32 %v1651, %v1770
  %v1772 = vpop.f32.mrb[0].mxu0
  %v1773 = vadd.f32 %v1655, %v1772
  %1774 = vmatprep.mubr.f32.mxu0 %v1502
  %1775 = vmatmul.mubr.f32.gmra.mrb[0].mxu0 %v1463
  %v1776 = vpop.f32.mrb[0].mxu0
  %v1777 = vadd.f32 %v1651, %v1776
  %v1778 = vpop.f32.mrb[0].mxu0
  %v1779 = vadd.f32 %v1655, %v1778
  %1780 = vmatprep.mubr.f32.mxu0 %v1503
  %1781 = vmatmul.mubr.f32.gmra.mrb[0].mxu0 %v1464
  %v1782 = vpop.f32.mrb[0].mxu0
  %v1783 = vadd.f32 %v1651, %v1782
  %v1784 = vpop.f32.mrb[0].mxu0
  %v1785 = vadd.f32 %v1655, %v1784
  %1786 = vmatprep.mubr.f32.mxu0 %v1504
  %1787 = vmatmul.mubr.f32.gmra.mrb[0].mxu0 %v1465
  %v1788 = vpop.f32.mrb[0].mxu0
  %v1789 = vadd.f32 %v1651, %v1788
  %v1790 = vpop.f32.mrb[0].mxu0
  %v1791 = vadd.f32 %v1655, %v1790
  %1792 = vmatprep.mubr.f32.mxu0 %v1505
  %1793 = vmatmul.mubr.f32.gmra.mrb[0].mxu0 %v1466
  %v1794 = vpop.f32.mrb[0].mxu0
  %v1795 = vadd.f32 %v1651, %v1794
  %v1796 = vpop.f32.mrb[0].mxu0
  %v1797 = vadd.f32 %v1655, %v1796
  %1798 = vmatprep.mubr.f32.mxu0 %v1506
  %1799 = vmatmul.mubr.f32.gmra.mrb[0].mxu0 %v1467
  %v1800 = vpop.f32.mrb[0].mxu0
  %v1801 = vadd.f32 %v1651, %v1800
  %v1802 = vpop.f32.mrb[0].mxu0
  %v1803 = vadd.f32 %v1655, %v1802
  %1804 = vmatprep.mubr.f32.mxu0 %v1507
  %1805 = vmatmul.mubr.f32.gmra.mrb[0].mxu0 %v1468
  %v1806 = vpop.f32.mrb[0].mxu0
  %v1807 = vadd.f32 %v1651, %v1806
  %v1808 = vpop.f32.mrb[0].mxu0
  %v1809 = vadd.f32 %v1655, %v1808
  %1810 = vmatprep.mubr.f32.mxu0 %v1508
  %1811 = vmatmul.mubr.f32.gmra.mrb[0].mxu0 %v1469
  %v1812 = vpop.f32.mrb[0].mxu0
  %v1813 = vadd.f32 %v1651, %v1812
  %v1814 = vpop.f32.mrb[0].mxu0
  %v1815 = vadd.f32 %v1655, %v1814
  %1816 = vmatprep.mubr.f32.mxu0 %v1509
  %1817 = vmatmul.mubr.f32.gmra.mrb[0].mxu0 %v1470
  %v1818 = vpop.f32.mrb[0].mxu0
  %v1819 = vadd.f32 %v1651, %v1818
  %v1820 = vpop.f32.mrb[0].mxu0
  %v1821 = vadd.f32 %v1655, %v1820
  %1822 = vmatprep.mubr.f32.mxu0 %v1510
  %1823 = vmatmul.mubr.f32.gmra.mrb[0].mxu0 %v1471
  %v1824 = vpop.f32.mrb[0].mxu0
  %v1825 = vadd.f32 %v1651, %v1824
  %v1826 = vpop.f32.mrb[0].mxu0
  %v1827 = vadd.f32 %v1655, %v1826
  %1828 = vmatprep.mubr.f32.mxu0 %v1511
  %1829 = vmatmul.mubr.f32.gmra.mrb[0].mxu0 %v1472
  %v1830 = vpop.f32.mrb[0].mxu0
  %v1831 = vadd.f32 %v1651, %v1830
  %v1832 = vpop.f32.mrb[0].mxu0
  %v1833 = vadd.f32 %v1655, %v1832
  %1834 = vmatprep.mubr.f32.mxu0 %v1512
  %1835 = vmatmul.mubr.f32.gmra.mrb[0].mxu0 %v1473
  %v1836 = vpop.f32.mrb[0].mxu0
  %v1837 = vadd.f32 %v1651, %v1836
  %v1838 = vpop.f32.mrb[0].mxu0
  %v1839 = vadd.f32 %v1655, %v1838
  %1840 = vmatprep.mubr.f32.mxu0 %v1513
  %1841 = vmatmul.mubr.f32.gmra.mrb[0].mxu0 %v1474
  %v1842 = vpop.f32.mrb[0].mxu0
  %v1843 = vadd.f32 %v1651, %v1842
  %v1844 = vpop.f32.mrb[0].mxu0
  %v1845 = vadd.f32 %v1655, %v1844
  %1846 = vmatprep.mubr.f32.mxu0 %v1514
  %1847 = vmatmul.mubr.f32.gmra.mrb[0].mxu0 %v1475
  %v1848 = vpop.f32.mrb[0].mxu0
  %v1849 = vadd.f32 %v1651, %v1848
  %v1850 = vpop.f32.mrb[0].mxu0
  %v1851 = vadd.f32 %v1655, %v1850
  %1852 = vmatprep.mubr.f32.mxu0 %v1515
  %1853 = vmatmul.mubr.f32.gmra.mrb[0].mxu0 %v1476
  %v1854 = vpop.f32.mrb[0].mxu0
  %v1855 = vadd.f32 %v1651, %v1854
  %v1856 = vpop.f32.mrb[0].mxu0
  %v1857 = vadd.f32 %v1655, %v1856
  %1858 = vmatprep.mubr.f32.mxu0 %v1516
  %1859 = vmatmul.mubr.f32.gmra.mrb[0].mxu0 %v1477
  %v1860 = vpop.f32.mrb[0].mxu0
  %v1861 = vadd.f32 %v1651, %v1860
  %v1862 = vpop.f32.mrb[0].mxu0
  %v1863 = vadd.f32 %v1655, %v1862
  %1864 = vmatprep.mubr.f32.mxu0 %v1517
  %1865 = vmatmul.mubr.f32.gmra.mrb[0].mxu0 %v1478
  %v1866 = vpop.f32.mrb[0].mxu0
  %v1867 = vadd.f32 %v1651, %v1866
  %v1868 = vpop.f32.mrb[0].mxu0
  %v1869 = vadd.f32 %v1655, %v1868
  %1870 = vmatprep.mubr.f32.mxu0 %v1518
  %1871 = vmatmul.mubr.f32.gmra.mrb[0].mxu0 %v1479
  %v1872 = vpop.f32.mrb[0].mxu0
  %v1873 = vadd.f32 %v1651, %v1872
  %v1874 = vpop.f32.mrb[0].mxu0
  %v1875 = vadd.f32 %v1655, %v1874
  %1876 = vmatprep.mubr.f32.mxu0 %v1519
  %1877 = vmatmul.mubr.f32.gmra.mrb[0].mxu0 %v1480
  %v1878 = vpop.f32.mrb[0].mxu0
  %v1879 = vadd.f32 %v1651, %v1878
  %v1880 = vpop.f32.mrb[0].mxu0
  %v1881 = vadd.f32 %v1655, %v1880
  %1882 = vdwg.mxu0
  %1883 = vmatprep.subr.mxu0 %v1605
  %1884 = vmatpush1.msra.mxu0 %v1604
  %1885 = vmatprep.subr.mxu0 %v1607
  %1886 = vmatpush1.msra.mxu0 %v1606
  %1887 = vmatprep.subr.mxu0 %v1609
  %1888 = vmatpush1.msra.mxu0 %v1608
  %1889 = vmatprep.subr.mxu0 %v1611
  %1890 = vmatpush1.msra.mxu0 %v1610
  %1891 = vmatprep.subr.mxu0 %v1613
  %1892 = vmatpush1.msra.mxu0 %v1612
  %1893 = vmatprep.subr.mxu0 %v1615
  %1894 = vmatpush1.msra.mxu0 %v1614
  %1895 = vmatprep.subr.mxu0 %v1617
  %1896 = vmatpush1.msra.mxu0 %v1616
  %1897 = vmatprep.subr.mxu0 %v1619
  %1898 = vmatpush1.msra.mxu0 %v1618
  %1899 = vmatprep.subr.mxu0 %v1621
  %1900 = vmatpush1.msra.mxu0 %v1620
  %1901 = vmatprep.subr.mxu0 %v1623
  %1902 = vmatpush1.msra.mxu0 %v1622
  %1903 = vmatprep.subr.mxu0 %v1625
  %1904 = vmatpush1.msra.mxu0 %v1624
  %1905 = vmatprep.subr.mxu0 %v1627
  %1906 = vmatpush1.msra.mxu0 %v1626
  %1907 = vmatprep.subr.mxu0 %v1629
  %1908 = vmatpush1.msra.mxu0 %v1628
  %1909 = vmatprep.subr.mxu0 %v1631
  %1910 = vmatpush1.msra.mxu0 %v1630
  %1911 = vmatprep.subr.mxu0 %v1633
  %1912 = vmatpush1.msra.mxu0 %v1632
  %1913 = vmatprep.subr.mxu0 %v1635
  %1914 = vmatpush1.msra.mxu0 %v1634
  %1915 = vmatprep.subr.mxu0 %v1637
  %1916 = vmatpush1.msra.mxu0 %v1636
  %1917 = vmatprep.subr.mxu0 %v1639
  %1918 = vmatpush1.msra.mxu0 %v1638
  %1919 = vmatprep.subr.mxu0 %v1641
  %1920 = vmatpush1.msra.mxu0 %v1640
  %1921 = vmatprep.subr.mxu0 %v1643
  %1922 = vmatpush1.msra.mxu0 %v1642
  %1923 = vmatprep.subr.mxu0 %v1702
  %1924 = vmatpush1.msra.mxu0 %v1699
  %1925 = vmatprep.subr.mxu0 0.0
  %1926 = vmatpush1.msra.mxu0 0.0
  %1927 = vmatprep.subr.mxu0 0.0
  %1928 = vmatpush1.msra.mxu0 0.0
  %1929 = vmatprep.subr.mxu0 0.0
  %1930 = vmatpush1.msra.mxu0 0.0
  %1931 = vmatprep.subr.mxu0 0.0
  %1932 = vmatpush1.msra.mxu0 0.0
  %1933 = vmatprep.subr.mxu0 0.0
  %1934 = vmatpush1.msra.mxu0 0.0
  %1935 = vmatprep.subr.mxu0 0.0
  %1936 = vmatpush1.msra.mxu0 0.0
  %1937 = vmatprep.subr.mxu0 0.0
  %1938 = vmatpush1.msra.mxu0 0.0
  %1939 = vmatprep.subr.mxu0 0.0
  %1940 = vmatpush1.msra.mxu0 0.0
  %1941 = vmatprep.subr.mxu0 0.0
  %1942 = vmatpush1.msra.mxu0 0.0
  %1943 = vmatprep.subr.mxu0 0.0
  %1944 = vmatpush1.msra.mxu0 0.0
  %1945 = vmatprep.subr.mxu0 0.0
  %1946 = vmatpush1.msra.mxu0 0.0
  %1947 = vmatprep.mubr.f32.mxu0 %v1659
  %1948 = vmatmul.mubr.f32.gmra.mrb[0].mxu0 %v1521
  %v1949 = vpop.f32.mrb[0].mxu0
  %v1950 = vadd.f32 %v1771, %v1949
  %v1951 = vpop.f32.mrb[0].mxu0
  %v1952 = vadd.f32 %v1773, %v1951
  %1953 = vmatprep.mubr.f32.mxu0 %v1661
  %1954 = vmatmul.mubr.f32.gmra.mrb[0].mxu0 %v1522
  %v1955 = vpop.f32.mrb[0].mxu0
  %v1956 = vadd.f32 %v1777, %v1955
  %v1957 = vpop.f32.mrb[0].mxu0
  %v1958 = vadd.f32 %v1779, %v1957
  %1959 = vmatprep.mubr.f32.mxu0 %v1663
  %1960 = vmatmul.mubr.f32.gmra.mrb[0].mxu0 %v1523
  %v1961 = vpop.f32.mrb[0].mxu0
  %v1962 = vadd.f32 %v1783, %v1961
  %v1963 = vpop.f32.mrb[0].mxu0
  %v1964 = vadd.f32 %v1785, %v1963
  %1965 = vmatprep.mubr.f32.mxu0 %v1665
  %1966 = vmatmul.mubr.f32.gmra.mrb[0].mxu0 %v1524
  %v1967 = vpop.f32.mrb[0].mxu0
  %v1968 = vadd.f32 %v1789, %v1967
  %v1969 = vpop.f32.mrb[0].mxu0
  %v1970 = vadd.f32 %v1791, %v1969
  %1971 = vmatprep.mubr.f32.mxu0 %v1667
  %1972 = vmatmul.mubr.f32.gmra.mrb[0].mxu0 %v1525
  %v1973 = vpop.f32.mrb[0].mxu0
  %v1974 = vadd.f32 %v1795, %v1973
  %v1975 = vpop.f32.mrb[0].mxu0
  %v1976 = vadd.f32 %v1797, %v1975
  %1977 = vmatprep.mubr.f32.mxu0 %v1669
  %1978 = vmatmul.mubr.f32.gmra.mrb[0].mxu0 %v1526
  %v1979 = vpop.f32.mrb[0].mxu0
  %v1980 = vadd.f32 %v1801, %v1979
  %v1981 = vpop.f32.mrb[0].mxu0
  %v1982 = vadd.f32 %v1803, %v1981
  %1983 = vmatprep.mubr.f32.mxu0 %v1671
  %1984 = vmatmul.mubr.f32.gmra.mrb[0].mxu0 %v1527
  %v1985 = vpop.f32.mrb[0].mxu0
  %v1986 = vadd.f32 %v1807, %v1985
  %v1987 = vpop.f32.mrb[0].mxu0
  %v1988 = vadd.f32 %v1809, %v1987
  %1989 = vmatprep.mubr.f32.mxu0 %v1673
  %1990 = vmatmul.mubr.f32.gmra.mrb[0].mxu0 %v1528
  %v1991 = vpop.f32.mrb[0].mxu0
  %v1992 = vadd.f32 %v1813, %v1991
  %v1993 = vpop.f32.mrb[0].mxu0
  %v1994 = vadd.f32 %v1815, %v1993
  %1995 = vmatprep.mubr.f32.mxu0 %v1675
  %1996 = vmatmul.mubr.f32.gmra.mrb[0].mxu0 %v1529
  %v1997 = vpop.f32.mrb[0].mxu0
  %v1998 = vadd.f32 %v1819, %v1997
  %v1999 = vpop.f32.mrb[0].mxu0
  %v2000 = vadd.f32 %v1821, %v1999
  %2001 = vmatprep.mubr.f32.mxu0 %v1677
  %2002 = vmatmul.mubr.f32.gmra.mrb[0].mxu0 %v1530
  %v2003 = vpop.f32.mrb[0].mxu0
  %v2004 = vadd.f32 %v1825, %v2003
  %v2005 = vpop.f32.mrb[0].mxu0
  %v2006 = vadd.f32 %v1827, %v2005
  %2007 = vmatprep.mubr.f32.mxu0 %v1679
  %2008 = vmatmul.mubr.f32.gmra.mrb[0].mxu0 %v1531
  %v2009 = vpop.f32.mrb[0].mxu0
  %v2010 = vadd.f32 %v1831, %v2009
  %v2011 = vpop.f32.mrb[0].mxu0
  %v2012 = vadd.f32 %v1833, %v2011
  %2013 = vmatprep.mubr.f32.mxu0 %v1681
  %2014 = vmatmul.mubr.f32.gmra.mrb[0].mxu0 %v1532
  %v2015 = vpop.f32.mrb[0].mxu0
  %v2016 = vadd.f32 %v1837, %v2015
  %v2017 = vpop.f32.mrb[0].mxu0
  %v2018 = vadd.f32 %v1839, %v2017
  %2019 = vmatprep.mubr.f32.mxu0 %v1683
  %2020 = vmatmul.mubr.f32.gmra.mrb[0].mxu0 %v1533
  %v2021 = vpop.f32.mrb[0].mxu0
  %v2022 = vadd.f32 %v1843, %v2021
  %v2023 = vpop.f32.mrb[0].mxu0
  %v2024 = vadd.f32 %v1845, %v2023
  %2025 = vmatprep.mubr.f32.mxu0 %v1685
  %2026 = vmatmul.mubr.f32.gmra.mrb[0].mxu0 %v1534
  %v2027 = vpop.f32.mrb[0].mxu0
  %v2028 = vadd.f32 %v1849, %v2027
  %v2029 = vpop.f32.mrb[0].mxu0
  %v2030 = vadd.f32 %v1851, %v2029
  %2031 = vmatprep.mubr.f32.mxu0 %v1687
  %2032 = vmatmul.mubr.f32.gmra.mrb[0].mxu0 %v1535
  %v2033 = vpop.f32.mrb[0].mxu0
  %v2034 = vadd.f32 %v1855, %v2033
  %v2035 = vpop.f32.mrb[0].mxu0
  %v2036 = vadd.f32 %v1857, %v2035
  %2037 = vmatprep.mubr.f32.mxu0 %v1689
  %2038 = vmatmul.mubr.f32.gmra.mrb[0].mxu0 %v1536
  %v2039 = vpop.f32.mrb[0].mxu0
  %v2040 = vadd.f32 %v1861, %v2039
  %v2041 = vpop.f32.mrb[0].mxu0
  %v2042 = vadd.f32 %v1863, %v2041
  %2043 = vmatprep.mubr.f32.mxu0 %v1691
  %2044 = vmatmul.mubr.f32.gmra.mrb[0].mxu0 %v1537
  %v2045 = vpop.f32.mrb[0].mxu0
  %v2046 = vadd.f32 %v1867, %v2045
  %v2047 = vpop.f32.mrb[0].mxu0
  %v2048 = vadd.f32 %v1869, %v2047
  %2049 = vmatprep.mubr.f32.mxu0 %v1693
  %2050 = vmatmul.mubr.f32.gmra.mrb[0].mxu0 %v1538
  %v2051 = vpop.f32.mrb[0].mxu0
  %v2052 = vadd.f32 %v1873, %v2051
  %v2053 = vpop.f32.mrb[0].mxu0
  %v2054 = vadd.f32 %v1875, %v2053
  %2055 = vmatprep.mubr.f32.mxu0 %v1695
  %2056 = vmatmul.mubr.f32.gmra.mrb[0].mxu0 %v1539
  %v2057 = vpop.f32.mrb[0].mxu0
  %v2058 = vadd.f32 %v1879, %v2057
  %v2059 = vpop.f32.mrb[0].mxu0
  %v2060 = vadd.f32 %v1881, %v2059
  %2061 = vdwg.mxu0
  %v2062 = vmax.f32 %v1950, 0.0
  %v2063 = vmax.f32 %v1952, 0.0
  %v2064 = vmax.f32 %v1956, 0.0
  %v2065 = vmax.f32 %v1958, 0.0
  %v2066 = vmax.f32 %v1962, 0.0
  %v2067 = vmax.f32 %v1964, 0.0
  %v2068 = vmax.f32 %v1968, 0.0
  %v2069 = vmax.f32 %v1970, 0.0
  %v2070 = vmax.f32 %v1974, 0.0
  %v2071 = vmax.f32 %v1976, 0.0
  %v2072 = vmax.f32 %v1980, 0.0
  %v2073 = vmax.f32 %v1982, 0.0
  %v2074 = vmax.f32 %v1986, 0.0
  %v2075 = vmax.f32 %v1988, 0.0
  %v2076 = vmax.f32 %v1992, 0.0
  %v2077 = vmax.f32 %v1994, 0.0
  %v2078 = vmax.f32 %v1998, 0.0
  %v2079 = vmax.f32 %v2000, 0.0
  %v2080 = vmax.f32 %v2004, 0.0
  %v2081 = vmax.f32 %v2006, 0.0
  %v2082 = vmax.f32 %v2010, 0.0
  %v2083 = vmax.f32 %v2012, 0.0
  %v2084 = vmax.f32 %v2016, 0.0
  %v2085 = vmax.f32 %v2018, 0.0
  %v2086 = vmax.f32 %v2022, 0.0
  %v2087 = vmax.f32 %v2024, 0.0
  %v2088 = vmax.f32 %v2028, 0.0
  %v2089 = vmax.f32 %v2030, 0.0
  %v2090 = vmax.f32 %v2034, 0.0
  %v2091 = vmax.f32 %v2036, 0.0
  %v2092 = vmax.f32 %v2040, 0.0
  %v2093 = vmax.f32 %v2042, 0.0
  %v2094 = vmax.f32 %v2046, 0.0
  %v2095 = vmax.f32 %v2048, 0.0
  %v2096 = vmax.f32 %v2052, 0.0
  %v2097 = vmax.f32 %v2054, 0.0
  %v2098 = vmax.f32 %v2058, 0.0
  %v2099 = vmax.f32 %v2060, 0.0
  %v2100 = vld [vmem:[%s6] sm:$0xff]
  %v2101 = vld [vmem:[%s6 + $0x8] sm:$0xff]
  %v2102 = vld [vmem:[%s6 + $0x10] sm:$0xff]
  %v2103 = vld [vmem:[%s6 + $0x18] sm:$0xff]
  %v2104 = vld [vmem:[%s6 + $0x20] sm:$0xff]
  %v2105 = vld [vmem:[%s6 + $0x28] sm:$0xff]
  %v2106 = vld [vmem:[%s6 + $0x30] sm:$0xff]
  %v2107 = vld [vmem:[%s6 + $0x38] sm:$0xff]
  %v2108 = vld [vmem:[%s6 + $0x40] sm:$0xff]
  %v2109 = vld [vmem:[%s6 + $0x48] sm:$0xff]
  %v2110 = vld [vmem:[%s6 + $0x50] sm:$0xff]
  %v2111 = vld [vmem:[%s6 + $0x58] sm:$0xff]
  %v2112 = vld [vmem:[%s6 + $0x60] sm:$0xff]
  %v2113 = vld [vmem:[%s6 + $0x68] sm:$0xff]
  %v2114 = vld [vmem:[%s6 + $0x70] sm:$0xff]
  %v2115 = vld [vmem:[%s6 + $0x78] sm:$0xff]
  %v2116 = vld [vmem:[%s6 + $0x80] sm:$0xff]
  %v2117 = vld [vmem:[%s6 + $0x88] sm:$0xff]
  %v2118 = vld [vmem:[%s6 + $0x90] sm:$0xff]
  %v2119 = vld [vmem:[%s6 + $0x98] sm:$0xff]
  %v2121 = vsel %vm358, %v2063, 0
  %v2124 = vsel %vm358, %v2065, 0
  %v2127 = vsel %vm358, %v2067, 0
  %v2130 = vsel %vm358, %v2069, 0
  %v2133 = vsel %vm358, %v2071, 0
  %v2136 = vsel %vm358, %v2073, 0
  %v2139 = vsel %vm358, %v2075, 0
  %v2142 = vsel %vm358, %v2077, 0
  %v2145 = vsel %vm358, %v2079, 0
  %v2148 = vsel %vm358, %v2081, 0
  %v2151 = vsel %vm358, %v2083, 0
  %v2154 = vsel %vm358, %v2085, 0
  %v2157 = vsel %vm358, %v2087, 0
  %v2160 = vsel %vm358, %v2089, 0
  %v2163 = vsel %vm358, %v2091, 0
  %v2166 = vsel %vm358, %v2093, 0
  %v2169 = vsel %vm358, %v2095, 0
  %v2172 = vsel %vm358, %v2097, 0
  %v2175 = vsel %vm358, %v2099, 0
  %2177 = vmatprep.subr.mxu0 0.0
  %2178 = vmatpush1.msra.mxu0 %v2100
  %2179 = vmatprep.subr.mxu0 0.0
  %2180 = vmatpush1.msra.mxu0 %v2101
  %2181 = vmatprep.subr.mxu0 0.0
  %2182 = vmatpush1.msra.mxu0 %v2102
  %2183 = vmatprep.subr.mxu0 0.0
  %2184 = vmatpush1.msra.mxu0 %v2103
  %2185 = vmatprep.subr.mxu0 0.0
  %2186 = vmatpush1.msra.mxu0 %v2104
  %2187 = vmatprep.subr.mxu0 0.0
  %2188 = vmatpush1.msra.mxu0 %v2105
  %2189 = vmatprep.subr.mxu0 0.0
  %2190 = vmatpush1.msra.mxu0 %v2106
  %2191 = vmatprep.subr.mxu0 0.0
  %2192 = vmatpush1.msra.mxu0 %v2107
  %2193 = vmatprep.subr.mxu0 0.0
  %2194 = vmatpush1.msra.mxu0 %v2108
  %2195 = vmatprep.subr.mxu0 0.0
  %2196 = vmatpush1.msra.mxu0 %v2109
  %2197 = vmatprep.subr.mxu0 0.0
  %2198 = vmatpush1.msra.mxu0 %v2110
  %2199 = vmatprep.subr.mxu0 0.0
  %2200 = vmatpush1.msra.mxu0 %v2111
  %2201 = vmatprep.subr.mxu0 0.0
  %2202 = vmatpush1.msra.mxu0 %v2112
  %2203 = vmatprep.subr.mxu0 0.0
  %2204 = vmatpush1.msra.mxu0 %v2113
  %2205 = vmatprep.subr.mxu0 0.0
  %2206 = vmatpush1.msra.mxu0 %v2114
  %2207 = vmatprep.subr.mxu0 0.0
  %2208 = vmatpush1.msra.mxu0 %v2115
  %2209 = vmatprep.subr.mxu0 0.0
  %2210 = vmatpush1.msra.mxu0 %v2116
  %2211 = vmatprep.subr.mxu0 0.0
  %2212 = vmatpush1.msra.mxu0 %v2117
  %2213 = vmatprep.subr.mxu0 0.0
  %2214 = vmatpush1.msra.mxu0 %v2118
  %2215 = vmatprep.subr.mxu0 0.0
  %2216 = vmatpush1.msra.mxu0 %v2119
  %2217 = vmatprep.subr.mxu0 0.0
  %2218 = vmatpush1.msra.mxu0 0.0
  %2219 = vmatprep.subr.mxu0 0.0
  %2220 = vmatpush1.msra.mxu0 0.0
  %2221 = vmatprep.subr.mxu0 0.0
  %2222 = vmatpush1.msra.mxu0 0.0
  %2223 = vmatprep.subr.mxu0 0.0
  %2224 = vmatpush1.msra.mxu0 0.0
  %2225 = vmatprep.subr.mxu0 0.0
  %2226 = vmatpush1.msra.mxu0 0.0
  %2227 = vmatprep.subr.mxu0 0.0
  %2228 = vmatpush1.msra.mxu0 0.0
  %2229 = vmatprep.subr.mxu0 0.0
  %2230 = vmatpush1.msra.mxu0 0.0
  %2231 = vmatprep.subr.mxu0 0.0
  %2232 = vmatpush1.msra.mxu0 0.0
  %2233 = vmatprep.subr.mxu0 0.0
  %2234 = vmatpush1.msra.mxu0 0.0
  %2235 = vmatprep.subr.mxu0 0.0
  %2236 = vmatpush1.msra.mxu0 0.0
  %2237 = vmatprep.subr.mxu0 0.0
  %2238 = vmatpush1.msra.mxu0 0.0
  %2239 = vmatprep.subr.mxu0 0.0
  %2240 = vmatpush1.msra.mxu0 0.0
  %2241 = vmatprep.mubr.f32.mxu0 %v2121
  %2242 = vmatmul.mubr.f32.gmra.mrb[0].mxu0 %v2062
  %v2243 = vpop.f32.mrb[0].mxu0
  %v2244 = vadd.f32 0.0, %v2243
  %v2245 = vpop.f32.mrb[0].mxu0
  %2246 = vmatprep.mubr.f32.mxu0 %v2124
  %2247 = vmatmul.mubr.f32.gmra.mrb[0].mxu0 %v2064
  %v2248 = vpop.f32.mrb[0].mxu0
  %v2249 = vpop.f32.mrb[0].mxu0
  %2250 = vmatprep.mubr.f32.mxu0 %v2127
  %2251 = vmatmul.mubr.f32.gmra.mrb[0].mxu0 %v2066
  %v2252 = vpop.f32.mrb[0].mxu0
  %v2253 = vadd.f32 0.0, %v2252
  %v2254 = vpop.f32.mrb[0].mxu0
  %2255 = vmatprep.mubr.f32.mxu0 %v2130
  %2256 = vmatmul.mubr.f32.gmra.mrb[0].mxu0 %v2068
  %v2257 = vpop.f32.mrb[0].mxu0
  %v2258 = vpop.f32.mrb[0].mxu0
  %2259 = vmatprep.mubr.f32.mxu0 %v2133
  %2260 = vmatmul.mubr.f32.gmra.mrb[0].mxu0 %v2070
  %v2261 = vpop.f32.mrb[0].mxu0
  %v2262 = vadd.f32 0.0, %v2261
  %v2263 = vpop.f32.mrb[0].mxu0
  %2264 = vmatprep.mubr.f32.mxu0 %v2136
  %2265 = vmatmul.mubr.f32.gmra.mrb[0].mxu0 %v2072
  %v2266 = vpop.f32.mrb[0].mxu0
  %v2267 = vpop.f32.mrb[0].mxu0
  %2268 = vmatprep.mubr.f32.mxu0 %v2139
  %2269 = vmatmul.mubr.f32.gmra.mrb[0].mxu0 %v2074
  %v2270 = vpop.f32.mrb[0].mxu0
  %v2271 = vadd.f32 0.0, %v2270
  %v2272 = vpop.f32.mrb[0].mxu0
  %2273 = vmatprep.mubr.f32.mxu0 %v2142
  %2274 = vmatmul.mubr.f32.gmra.mrb[0].mxu0 %v2076
  %v2275 = vpop.f32.mrb[0].mxu0
  %v2276 = vpop.f32.mrb[0].mxu0
  %2277 = vmatprep.mubr.f32.mxu0 %v2145
  %2278 = vmatmul.mubr.f32.gmra.mrb[0].mxu0 %v2078
  %v2279 = vpop.f32.mrb[0].mxu0
  %v2280 = vadd.f32 0.0, %v2279
  %v2281 = vpop.f32.mrb[0].mxu0
  %2282 = vmatprep.mubr.f32.mxu0 %v2148
  %2283 = vmatmul.mubr.f32.gmra.mrb[0].mxu0 %v2080
  %v2284 = vpop.f32.mrb[0].mxu0
  %v2285 = vpop.f32.mrb[0].mxu0
  %2286 = vmatprep.mubr.f32.mxu0 %v2151
  %2287 = vmatmul.mubr.f32.gmra.mrb[0].mxu0 %v2082
  %v2288 = vpop.f32.mrb[0].mxu0
  %v2289 = vadd.f32 0.0, %v2288
  %v2290 = vpop.f32.mrb[0].mxu0
  %2291 = vmatprep.mubr.f32.mxu0 %v2154
  %2292 = vmatmul.mubr.f32.gmra.mrb[0].mxu0 %v2084
  %v2293 = vpop.f32.mrb[0].mxu0
  %v2294 = vpop.f32.mrb[0].mxu0
  %2295 = vmatprep.mubr.f32.mxu0 %v2157
  %2296 = vmatmul.mubr.f32.gmra.mrb[0].mxu0 %v2086
  %v2297 = vpop.f32.mrb[0].mxu0
  %v2298 = vadd.f32 0.0, %v2297
  %v2299 = vpop.f32.mrb[0].mxu0
  %2300 = vmatprep.mubr.f32.mxu0 %v2160
  %2301 = vmatmul.mubr.f32.gmra.mrb[0].mxu0 %v2088
  %v2302 = vpop.f32.mrb[0].mxu0
  %v2303 = vpop.f32.mrb[0].mxu0
  %2304 = vmatprep.mubr.f32.mxu0 %v2163
  %2305 = vmatmul.mubr.f32.gmra.mrb[0].mxu0 %v2090
  %v2306 = vpop.f32.mrb[0].mxu0
  %v2307 = vadd.f32 0.0, %v2306
  %v2308 = vpop.f32.mrb[0].mxu0
  %2309 = vmatprep.mubr.f32.mxu0 %v2166
  %2310 = vmatmul.mubr.f32.gmra.mrb[0].mxu0 %v2092
  %v2311 = vpop.f32.mrb[0].mxu0
  %v2312 = vpop.f32.mrb[0].mxu0
  %2313 = vmatprep.mubr.f32.mxu0 %v2169
  %2314 = vmatmul.mubr.f32.gmra.mrb[0].mxu0 %v2094
  %v2315 = vpop.f32.mrb[0].mxu0
  %v2316 = vadd.f32 0.0, %v2315
  %v2317 = vpop.f32.mrb[0].mxu0
  %2318 = vmatprep.mubr.f32.mxu0 %v2172
  %2319 = vmatmul.mubr.f32.gmra.mrb[0].mxu0 %v2096
  %v2320 = vpop.f32.mrb[0].mxu0
  %v2321 = vpop.f32.mrb[0].mxu0
  %2322 = vmatprep.mubr.f32.mxu0 %v2175
  %2323 = vmatmul.mubr.f32.gmra.mrb[0].mxu0 %v2098
  %v2324 = vpop.f32.mrb[0].mxu0
  %v2325 = vadd.f32 0.0, %v2324
  %v2326 = vpop.f32.mrb[0].mxu0
  %2327 = vdwg.mxu0
  %v2328 = vadd.f32 %v2244, %v2253
  %v2329 = vadd.f32 %v2262, %v2271
  %v2330 = vadd.f32 %v2280, %v2289
  %v2331 = vadd.f32 %v2298, %v2307
  %v2332 = vadd.f32 %v2316, %v2325
  %v2333 = vmul.f32 %v2328, 0.5
  %v2334 = vmul.f32 %v2329, 0.5
  %v2335 = vmul.f32 %v2330, 0.5
  %v2336 = vmul.f32 %v2331, 0.5
  %v2337 = vmul.f32 %v2332, 0.5
  %2339 = vrot.lane.b32.xlu0 %v2334, 80
  %v2340 = vpop.permute.xlu0 %2339
  %2343 = vrot.lane.b32.xlu0 %v2335, 32
  %v2344 = vpop.permute.xlu0 %2343
  %2347 = vrot.lane.b32.xlu0 %v2336, 112
  %v2348 = vpop.permute.xlu0 %2347
  %2351 = vrot.lane.b32.xlu0 %v2337, 64
  %v2352 = vpop.permute.xlu0 %2351
  %v2354 = vsel %vm1520, %v2333, %v2340
  %v2355 = vsel %vm358, %v2340, %v2344
  %vm2356 = vcmask 916480
  %v2357 = vsel %vm2356, %v2355, %v2348
  %v2358 = vsel %vm387, %v2348, %v2352
  %v2359 = vld [vmem:[%s7] sm:$0xff]
  %v2360 = vld [vmem:[%s7 + $0x8] sm:$0xff]
  %v2361 = vld [vmem:[%s7 + $0x10] sm:$0xff]
  %v2362 = vld [vmem:[%s7 + $0x18] sm:$0xff]
  %v2363 = vld [vmem:[%s7 + $0x20] sm:$0xff]
  %v2364 = vld [vmem:[%s7 + $0x28] sm:$0xff]
  %v2365 = vld [vmem:[%s7 + $0x30] sm:$0xff]
  %v2366 = vld [vmem:[%s7 + $0x38] sm:$0xff]
  %v2367 = vld [vmem:[%s7 + $0x40] sm:$0xff]
  %v2368 = vld [vmem:[%s7 + $0x48] sm:$0xff]
  %v2369 = vld [vmem:[%s7 + $0x50] sm:$0xff]
  %v2370 = vld [vmem:[%s7 + $0x58] sm:$0xff]
  %v2371 = vld [vmem:[%s7 + $0x60] sm:$0xff]
  %v2372 = vld [vmem:[%s7 + $0x68] sm:$0xff]
  %v2373 = vld [vmem:[%s7 + $0x70] sm:$0xff]
  %v2374 = vld [vmem:[%s7 + $0x78] sm:$0xff]
  %v2375 = vld [vmem:[%s7 + $0x80] sm:$0xff]
  %v2376 = vld [vmem:[%s7 + $0x88] sm:$0xff]
  %v2377 = vld [vmem:[%s7 + $0x90] sm:$0xff]
  %v2378 = vld [vmem:[%s7 + $0x98] sm:$0xff]
  %v2379 = vld [vmem:[%s7 + $0xa0] sm:$0xff]
  %v2380 = vld [vmem:[%s7 + $0xa8] sm:$0xff]
  %v2381 = vld [vmem:[%s7 + $0xb0] sm:$0xff]
  %v2382 = vld [vmem:[%s7 + $0xb8] sm:$0xff]
  %v2383 = vld [vmem:[%s7 + $0xc0] sm:$0xff]
  %v2384 = vld [vmem:[%s7 + $0xc8] sm:$0xff]
  %v2385 = vld [vmem:[%s7 + $0xd0] sm:$0xff]
  %v2386 = vld [vmem:[%s7 + $0xd8] sm:$0xff]
  %v2387 = vld [vmem:[%s7 + $0xe0] sm:$0xff]
  %v2388 = vld [vmem:[%s7 + $0xe8] sm:$0xff]
  %v2389 = vld [vmem:[%s7 + $0xf0] sm:$0xff]
  %v2390 = vld [vmem:[%s7 + $0xf8] sm:$0xff]
  %v2391 = vld [vmem:[%s7 + $0x100] sm:$0xff]
  %v2392 = vld [vmem:[%s7 + $0x108] sm:$0xff]
  %v2393 = vld [vmem:[%s7 + $0x110] sm:$0xff]
  %v2394 = vld [vmem:[%s7 + $0x118] sm:$0xff]
  %v2395 = vld [vmem:[%s7 + $0x120] sm:$0xff]
  %v2396 = vld [vmem:[%s7 + $0x128] sm:$0xff]
  %v2397 = vld [vmem:[%s7 + $0x130] sm:$0xff]
  %v2398 = vld [vmem:[%s7 + $0x138] sm:$0xff]
  %v2399 = vld [vmem:[%s7 + $0x140] sm:$0xff]
  %v2400 = vld [vmem:[%s7 + $0x148] sm:$0xff]
  %v2401 = vld [vmem:[%s7 + $0x150] sm:$0xff]
  %v2402 = vld [vmem:[%s7 + $0x158] sm:$0xff]
  %v2403 = vld [vmem:[%s7 + $0x160] sm:$0xff]
  %v2404 = vld [vmem:[%s7 + $0x168] sm:$0xff]
  %v2405 = vld [vmem:[%s7 + $0x170] sm:$0xff]
  %v2406 = vld [vmem:[%s7 + $0x178] sm:$0xff]
  %v2407 = vld [vmem:[%s7 + $0x180] sm:$0xff]
  %v2408 = vld [vmem:[%s7 + $0x188] sm:$0xff]
  %v2409 = vld [vmem:[%s8] sm:$0x1]
  %v2411 = vlaneseq
  %v2412 = vshrl.u32 %v2411, 7
  %v2413 = vsub.s32 0, %v2412
  %v2414 = vrot.slane %v2409, %v2413
  %vm2416 = vcmask 130048
  %v2417 = vsel %vm2416, %v2352, 0
  %2419 = vmatprep.subr.mxu0 0.0
  %2420 = vmatpush1.msra.mxu0 %v2359
  %2421 = vmatprep.subr.mxu0 0.0
  %2422 = vmatpush1.msra.mxu0 %v2360
  %2423 = vmatprep.subr.mxu0 0.0
  %2424 = vmatpush1.msra.mxu0 %v2361
  %2425 = vmatprep.subr.mxu0 0.0
  %2426 = vmatpush1.msra.mxu0 %v2362
  %2427 = vmatprep.subr.mxu0 0.0
  %2428 = vmatpush1.msra.mxu0 %v2363
  %2429 = vmatprep.subr.mxu0 0.0
  %2430 = vmatpush1.msra.mxu0 %v2364
  %2431 = vmatprep.subr.mxu0 0.0
  %2432 = vmatpush1.msra.mxu0 %v2365
  %2433 = vmatprep.subr.mxu0 0.0
  %2434 = vmatpush1.msra.mxu0 %v2366
  %2435 = vmatprep.subr.mxu0 0.0
  %2436 = vmatpush1.msra.mxu0 %v2367
  %2437 = vmatprep.subr.mxu0 0.0
  %2438 = vmatpush1.msra.mxu0 %v2368
  %2439 = vmatprep.subr.mxu0 0.0
  %2440 = vmatpush1.msra.mxu0 %v2369
  %2441 = vmatprep.subr.mxu0 0.0
  %2442 = vmatpush1.msra.mxu0 %v2370
  %2443 = vmatprep.subr.mxu0 0.0
  %2444 = vmatpush1.msra.mxu0 %v2371
  %2445 = vmatprep.subr.mxu0 0.0
  %2446 = vmatpush1.msra.mxu0 %v2372
  %2447 = vmatprep.subr.mxu0 0.0
  %2448 = vmatpush1.msra.mxu0 %v2373
  %2449 = vmatprep.subr.mxu0 0.0
  %2450 = vmatpush1.msra.mxu0 %v2374
  %2451 = vmatprep.subr.mxu0 0.0
  %2452 = vmatpush1.msra.mxu0 %v2375
  %2453 = vmatprep.subr.mxu0 0.0
  %2454 = vmatpush1.msra.mxu0 %v2376
  %2455 = vmatprep.subr.mxu0 0.0
  %2456 = vmatpush1.msra.mxu0 %v2377
  %2457 = vmatprep.subr.mxu0 0.0
  %2458 = vmatpush1.msra.mxu0 %v2378
  %2459 = vmatprep.subr.mxu0 0.0
  %2460 = vmatpush1.msra.mxu0 %v2379
  %2461 = vmatprep.subr.mxu0 0.0
  %2462 = vmatpush1.msra.mxu0 %v2380
  %2463 = vmatprep.subr.mxu0 0.0
  %2464 = vmatpush1.msra.mxu0 %v2381
  %2465 = vmatprep.subr.mxu0 0.0
  %2466 = vmatpush1.msra.mxu0 %v2382
  %2467 = vmatprep.subr.mxu0 0.0
  %2468 = vmatpush1.msra.mxu0 %v2383
  %2469 = vmatprep.subr.mxu0 0.0
  %2470 = vmatpush1.msra.mxu0 %v2384
  %2471 = vmatprep.subr.mxu0 0.0
  %2472 = vmatpush1.msra.mxu0 %v2385
  %2473 = vmatprep.subr.mxu0 0.0
  %2474 = vmatpush1.msra.mxu0 %v2386
  %2475 = vmatprep.subr.mxu0 0.0
  %2476 = vmatpush1.msra.mxu0 %v2387
  %2477 = vmatprep.subr.mxu0 0.0
  %2478 = vmatpush1.msra.mxu0 %v2388
  %2479 = vmatprep.subr.mxu0 0.0
  %2480 = vmatpush1.msra.mxu0 %v2389
  %2481 = vmatprep.subr.mxu0 0.0
  %2482 = vmatpush1.msra.mxu0 %v2390
  %2483 = vmatprep.mubr.f32.mxu0 %v2357
  %2484 = vmatmul.mubr.f32.gmra.mrb[0].mxu0 %v2354
  %v2485 = vpop.f32.mrb[0].mxu0
  %v2486 = vadd.f32 %v2414, %v2485
  %v2487 = vpop.f32.mrb[0].mxu0
  %2488 = vdwg.mxu0
  %2489 = vmatprep.subr.mxu0 0.0
  %2490 = vmatpush1.msra.mxu0 %v2391
  %2491 = vmatprep.subr.mxu0 0.0
  %2492 = vmatpush1.msra.mxu0 %v2392
  %2493 = vmatprep.subr.mxu0 0.0
  %2494 = vmatpush1.msra.mxu0 %v2393
  %2495 = vmatprep.subr.mxu0 0.0
  %2496 = vmatpush1.msra.mxu0 %v2394
  %2497 = vmatprep.subr.mxu0 0.0
  %2498 = vmatpush1.msra.mxu0 %v2395
  %2499 = vmatprep.subr.mxu0 0.0
  %2500 = vmatpush1.msra.mxu0 %v2396
  %2501 = vmatprep.subr.mxu0 0.0
  %2502 = vmatpush1.msra.mxu0 %v2397
  %2503 = vmatprep.subr.mxu0 0.0
  %2504 = vmatpush1.msra.mxu0 %v2398
  %2505 = vmatprep.subr.mxu0 0.0
  %2506 = vmatpush1.msra.mxu0 %v2399
  %2507 = vmatprep.subr.mxu0 0.0
  %2508 = vmatpush1.msra.mxu0 %v2400
  %2509 = vmatprep.subr.mxu0 0.0
  %2510 = vmatpush1.msra.mxu0 %v2401
  %2511 = vmatprep.subr.mxu0 0.0
  %2512 = vmatpush1.msra.mxu0 %v2402
  %2513 = vmatprep.subr.mxu0 0.0
  %2514 = vmatpush1.msra.mxu0 %v2403
  %2515 = vmatprep.subr.mxu0 0.0
  %2516 = vmatpush1.msra.mxu0 %v2404
  %2517 = vmatprep.subr.mxu0 0.0
  %2518 = vmatpush1.msra.mxu0 %v2405
  %2519 = vmatprep.subr.mxu0 0.0
  %2520 = vmatpush1.msra.mxu0 %v2406
  %2521 = vmatprep.subr.mxu0 0.0
  %2522 = vmatpush1.msra.mxu0 %v2407
  %2523 = vmatprep.subr.mxu0 0.0
  %2524 = vmatpush1.msra.mxu0 %v2408
  %2525 = vmatprep.subr.mxu0 0.0
  %2526 = vmatpush1.msra.mxu0 0.0
  %2527 = vmatprep.subr.mxu0 0.0
  %2528 = vmatpush1.msra.mxu0 0.0
  %2529 = vmatprep.subr.mxu0 0.0
  %2530 = vmatpush1.msra.mxu0 0.0
  %2531 = vmatprep.subr.mxu0 0.0
  %2532 = vmatpush1.msra.mxu0 0.0
  %2533 = vmatprep.subr.mxu0 0.0
  %2534 = vmatpush1.msra.mxu0 0.0
  %2535 = vmatprep.subr.mxu0 0.0
  %2536 = vmatpush1.msra.mxu0 0.0
  %2537 = vmatprep.subr.mxu0 0.0
  %2538 = vmatpush1.msra.mxu0 0.0
  %2539 = vmatprep.subr.mxu0 0.0
  %2540 = vmatpush1.msra.mxu0 0.0
  %2541 = vmatprep.subr.mxu0 0.0
  %2542 = vmatpush1.msra.mxu0 0.0
  %2543 = vmatprep.subr.mxu0 0.0
  %2544 = vmatpush1.msra.mxu0 0.0
  %2545 = vmatprep.subr.mxu0 0.0
  %2546 = vmatpush1.msra.mxu0 0.0
  %2547 = vmatprep.subr.mxu0 0.0
  %2548 = vmatpush1.msra.mxu0 0.0
  %2549 = vmatprep.subr.mxu0 0.0
  %2550 = vmatpush1.msra.mxu0 0.0
  %2551 = vmatprep.subr.mxu0 0.0
  %2552 = vmatpush1.msra.mxu0 0.0
  %2553 = vmatprep.mubr.f32.mxu0 %v2417
  %2554 = vmatmul.mubr.f32.gmra.mrb[0].mxu0 %v2358
  %v2555 = vpop.f32.mrb[0].mxu0
  %v2556 = vadd.f32 %v2486, %v2555
  %v2557 = vpop.f32.mrb[0].mxu0
  %2558 = vdwg.mxu0
  %v2559 = vmax.f32 %v2556, 0.0
  %v2560 = vld [vmem:[%s9] sm:$0xff]
  %v2561 = vld [vmem:[%s9 + $0x8] sm:$0xff]
  %v2562 = vld [vmem:[%s9 + $0x10] sm:$0xff]
  %v2563 = vld [vmem:[%s9 + $0x18] sm:$0xff]
  %v2564 = vld [vmem:[%s9 + $0x20] sm:$0xff]
  %v2565 = vld [vmem:[%s9 + $0x28] sm:$0xff]
  %v2566 = vld [vmem:[%s9 + $0x30] sm:$0xff]
  %v2567 = vld [vmem:[%s9 + $0x38] sm:$0xff]
  %v2568 = vld [vmem:[%s9 + $0x40] sm:$0xff]
  %v2569 = vld [vmem:[%s9 + $0x48] sm:$0xff]
  %v2570 = vld [vmem:[%s9 + $0x50] sm:$0xff]
  %v2571 = vld [vmem:[%s9 + $0x58] sm:$0xff]
  %v2572 = vld [vmem:[%s9 + $0x60] sm:$0xff]
  %v2573 = vld [vmem:[%s9 + $0x68] sm:$0xff]
  %v2574 = vld [vmem:[%s9 + $0x70] sm:$0xff]
  %v2575 = vld [vmem:[%s9 + $0x78] sm:$0xff]
  %v2576 = vld [vmem:[%s10] sm:$0x1]
  %v2578 = vlaneseq
  %v2579 = vshrl.u32 %v2578, 7
  %v2580 = vsub.s32 0, %v2579
  %v2581 = vrot.slane %v2576, %v2580
  %2583 = vmatprep.subr.mxu0 0.0
  %2584 = vmatpush1.msra.mxu0 %v2560
  %2585 = vmatprep.subr.mxu0 0.0
  %2586 = vmatpush1.msra.mxu0 %v2561
  %2587 = vmatprep.subr.mxu0 0.0
  %2588 = vmatpush1.msra.mxu0 %v2562
  %2589 = vmatprep.subr.mxu0 0.0
  %2590 = vmatpush1.msra.mxu0 %v2563
  %2591 = vmatprep.subr.mxu0 0.0
  %2592 = vmatpush1.msra.mxu0 %v2564
  %2593 = vmatprep.subr.mxu0 0.0
  %2594 = vmatpush1.msra.mxu0 %v2565
  %2595 = vmatprep.subr.mxu0 0.0
  %2596 = vmatpush1.msra.mxu0 %v2566
  %2597 = vmatprep.subr.mxu0 0.0
  %2598 = vmatpush1.msra.mxu0 %v2567
  %2599 = vmatprep.subr.mxu0 0.0
  %2600 = vmatpush1.msra.mxu0 %v2568
  %2601 = vmatprep.subr.mxu0 0.0
  %2602 = vmatpush1.msra.mxu0 %v2569
  %2603 = vmatprep.subr.mxu0 0.0
  %2604 = vmatpush1.msra.mxu0 %v2570
  %2605 = vmatprep.subr.mxu0 0.0
  %2606 = vmatpush1.msra.mxu0 %v2571
  %2607 = vmatprep.subr.mxu0 0.0
  %2608 = vmatpush1.msra.mxu0 %v2572
  %2609 = vmatprep.subr.mxu0 0.0
  %2610 = vmatpush1.msra.mxu0 %v2573
  %2611 = vmatprep.subr.mxu0 0.0
  %2612 = vmatpush1.msra.mxu0 %v2574
  %2613 = vmatprep.subr.mxu0 0.0
  %2614 = vmatpush1.msra.mxu0 %v2575
  %2615 = vmatprep.subr.mxu0 0.0
  %2616 = vmatpush1.msra.mxu0 0.0
  %2617 = vmatprep.subr.mxu0 0.0
  %2618 = vmatpush1.msra.mxu0 0.0
  %2619 = vmatprep.subr.mxu0 0.0
  %2620 = vmatpush1.msra.mxu0 0.0
  %2621 = vmatprep.subr.mxu0 0.0
  %2622 = vmatpush1.msra.mxu0 0.0
  %2623 = vmatprep.subr.mxu0 0.0
  %2624 = vmatpush1.msra.mxu0 0.0
  %2625 = vmatprep.subr.mxu0 0.0
  %2626 = vmatpush1.msra.mxu0 0.0
  %2627 = vmatprep.subr.mxu0 0.0
  %2628 = vmatpush1.msra.mxu0 0.0
  %2629 = vmatprep.subr.mxu0 0.0
  %2630 = vmatpush1.msra.mxu0 0.0
  %2631 = vmatprep.subr.mxu0 0.0
  %2632 = vmatpush1.msra.mxu0 0.0
  %2633 = vmatprep.subr.mxu0 0.0
  %2634 = vmatpush1.msra.mxu0 0.0
  %2635 = vmatprep.subr.mxu0 0.0
  %2636 = vmatpush1.msra.mxu0 0.0
  %2637 = vmatprep.subr.mxu0 0.0
  %2638 = vmatpush1.msra.mxu0 0.0
  %2639 = vmatprep.subr.mxu0 0.0
  %2640 = vmatpush1.msra.mxu0 0.0
  %2641 = vmatprep.subr.mxu0 0.0
  %2642 = vmatpush1.msra.mxu0 0.0
  %2643 = vmatprep.subr.mxu0 0.0
  %2644 = vmatpush1.msra.mxu0 0.0
  %2645 = vmatprep.subr.mxu0 0.0
  %2646 = vmatpush1.msra.mxu0 0.0
  %2647 = vmatprep.mubr.f32.mxu0 0.0
  %2648 = vmatmul.mubr.f32.gmra.mrb[0].mxu0 %v2559
  %v2649 = vpop.f32.mrb[0].mxu0
  %v2650 = vadd.f32 %v2581, %v2649
  %v2651 = vpop.f32.mrb[0].mxu0
  %2652 = vdwg.mxu0
  %v2653 = vmax.f32 %v2650, 0.0
  %v2654 = vld [vmem:[%s11] sm:$0xff]
  %v2655 = vld [vmem:[%s11 + $0x8] sm:$0xff]
  %v2656 = vld [vmem:[%s11 + $0x10] sm:$0xff]
  %v2657 = vld [vmem:[%s11 + $0x18] sm:$0xff]
  %v2658 = vld [vmem:[%s11 + $0x20] sm:$0xff]
  %v2659 = vld [vmem:[%s11 + $0x28] sm:$0xff]
  %v2660 = vld [vmem:[%s11 + $0x30] sm:$0xff]
  %v2661 = vld [vmem:[%s11 + $0x38] sm:$0xff]
  %v2662 = vld [vmem:[%s11 + $0x40] sm:$0xff]
  %v2663 = vld [vmem:[%s11 + $0x48] sm:$0xff]
  %v2664 = vld [vmem:[%s11 + $0x50] sm:$0xff]
  %v2665 = vld [vmem:[%s11 + $0x58] sm:$0xff]
  %v2666 = vld [vmem:[%s11 + $0x60] sm:$0xff]
  %v2667 = vld [vmem:[%s11 + $0x68] sm:$0xff]
  %v2668 = vld [vmem:[%s11 + $0x70] sm:$0xff]
  %v2669 = vld [vmem:[%s11 + $0x78] sm:$0xff]
  %v2670 = vld [vmem:[%s12] sm:$0x1]
  %v2672 = vlaneseq
  %v2673 = vshrl.u32 %v2672, 7
  %v2674 = vsub.s32 0, %v2673
  %v2675 = vrot.slane %v2670, %v2674
  %2677 = vmatprep.subr.mxu0 0.0
  %2678 = vmatpush1.msra.mxu0 %v2654
  %2679 = vmatprep.subr.mxu0 0.0
  %2680 = vmatpush1.msra.mxu0 %v2655
  %2681 = vmatprep.subr.mxu0 0.0
  %2682 = vmatpush1.msra.mxu0 %v2656
  %2683 = vmatprep.subr.mxu0 0.0
  %2684 = vmatpush1.msra.mxu0 %v2657
  %2685 = vmatprep.subr.mxu0 0.0
  %2686 = vmatpush1.msra.mxu0 %v2658
  %2687 = vmatprep.subr.mxu0 0.0
  %2688 = vmatpush1.msra.mxu0 %v2659
  %2689 = vmatprep.subr.mxu0 0.0
  %2690 = vmatpush1.msra.mxu0 %v2660
  %2691 = vmatprep.subr.mxu0 0.0
  %2692 = vmatpush1.msra.mxu0 %v2661
  %2693 = vmatprep.subr.mxu0 0.0
  %2694 = vmatpush1.msra.mxu0 %v2662
  %2695 = vmatprep.subr.mxu0 0.0
  %2696 = vmatpush1.msra.mxu0 %v2663
  %2697 = vmatprep.subr.mxu0 0.0
  %2698 = vmatpush1.msra.mxu0 %v2664
  %2699 = vmatprep.subr.mxu0 0.0
  %2700 = vmatpush1.msra.mxu0 %v2665
  %2701 = vmatprep.subr.mxu0 0.0
  %2702 = vmatpush1.msra.mxu0 %v2666
  %2703 = vmatprep.subr.mxu0 0.0
  %2704 = vmatpush1.msra.mxu0 %v2667
  %2705 = vmatprep.subr.mxu0 0.0
  %2706 = vmatpush1.msra.mxu0 %v2668
  %2707 = vmatprep.subr.mxu0 0.0
  %2708 = vmatpush1.msra.mxu0 %v2669
  %2709 = vmatprep.subr.mxu0 0.0
  %2710 = vmatpush1.msra.mxu0 0.0
  %2711 = vmatprep.subr.mxu0 0.0
  %2712 = vmatpush1.msra.mxu0 0.0
  %2713 = vmatprep.subr.mxu0 0.0
  %2714 = vmatpush1.msra.mxu0 0.0
  %2715 = vmatprep.subr.mxu0 0.0
  %2716 = vmatpush1.msra.mxu0 0.0
  %2717 = vmatprep.subr.mxu0 0.0
  %2718 = vmatpush1.msra.mxu0 0.0
  %2719 = vmatprep.subr.mxu0 0.0
  %2720 = vmatpush1.msra.mxu0 0.0
  %2721 = vmatprep.subr.mxu0 0.0
  %2722 = vmatpush1.msra.mxu0 0.0
  %2723 = vmatprep.subr.mxu0 0.0
  %2724 = vmatpush1.msra.mxu0 0.0
  %2725 = vmatprep.subr.mxu0 0.0
  %2726 = vmatpush1.msra.mxu0 0.0
  %2727 = vmatprep.subr.mxu0 0.0
  %2728 = vmatpush1.msra.mxu0 0.0
  %2729 = vmatprep.subr.mxu0 0.0
  %2730 = vmatpush1.msra.mxu0 0.0
  %2731 = vmatprep.subr.mxu0 0.0
  %2732 = vmatpush1.msra.mxu0 0.0
  %2733 = vmatprep.subr.mxu0 0.0
  %2734 = vmatpush1.msra.mxu0 0.0
  %2735 = vmatprep.subr.mxu0 0.0
  %2736 = vmatpush1.msra.mxu0 0.0
  %2737 = vmatprep.subr.mxu0 0.0
  %2738 = vmatpush1.msra.mxu0 0.0
  %2739 = vmatprep.subr.mxu0 0.0
  %2740 = vmatpush1.msra.mxu0 0.0
  %2741 = vmatprep.mubr.f32.mxu0 0.0
  %2742 = vmatmul.mubr.f32.gmra.mrb[0].mxu0 %v2653
  %v2743 = vpop.f32.mrb[0].mxu0
  %v2744 = vadd.f32 %v2675, %v2743
  %v2745 = vpop.f32.mrb[0].mxu0
  %2746 = vdwg.mxu0
  %2747 = vst [vmem:[%s13] sm:$0xff] %v2744
  // Predicated region
  $region54: #{fwd.1} parent=0 // pred_check
    _
  $region55: #{fwd.1} parent=0 // pred_check_branch
    %2749 = sbr.rel (0) target = $region57
  $region56: #{fwd.1} parent=0 // pred_region
    _
  $region57: #{fwd.1} parent=0 // pred_fallthru
    _
  // Predicated region
  $region58: #{fwd.1} parent=0 // pred_check
    _
  $region59: #{fwd.1} parent=0 // pred_check_branch
    %2751 = sbr.rel (0) target = $region61
  $region60: #{fwd.1} parent=0 // pred_region
    _
  $region61: #{fwd.1} parent=0 // pred_fallthru
    _

</llo_original>
